<compile_context>
chip_gen: v6e
topology: v6e:2x2x1
jax: 0.10.0
libtpu: 0.0.40
codegen_flags: <defaults>
</compile_context>

<pallas_src>
import functools

import jax
import jax.numpy as jnp
from jax.experimental import pallas as pl
from jax.experimental.pallas import tpu as pltpu


def _round_up(x, m):
    return (x + m - 1) // m * m


def _gcn_aggregate_kernel(a_ref, z_ref, b_ref, o_ref, acc_ref):
    """One (row_tile, col_tile) grid step of relu(A_hat @ Z + b)."""
    k = pl.program_id(1)

    @pl.when(k == 0)
    def _():
        acc_ref[...] = jnp.zeros_like(acc_ref)

    # bf16 x bf16 -> f32 accumulation on the MXU.
    acc_ref[...] += jnp.dot(a_ref[...], z_ref[...],
                            preferred_element_type=jnp.float32)

    @pl.when(k == pl.num_programs(1) - 1)
    def _():
        # Bias add + ReLU fused into the finalize step (f32 VPU path).
        o_ref[...] = jnp.maximum(acc_ref[...] + b_ref[...], 0.0)


def gcn_aggregate(a_bf16, z_bf16, bias_f32, *, block=512):
    """relu(A_hat @ Z + b) as a tiled Pallas kernel.

    a_bf16   : [N, N] bfloat16 normalized adjacency.
    z_bf16   : [N, F] bfloat16 transformed node features (Z = H @ W).
    bias_f32 : [1, F] float32 bias.
    Returns  : [N, F] float32 activations.
    """
    n = a_bf16.shape[0]
    f = z_bf16.shape[1]

    # Tile edge: a multiple of 128, capped by `block` (default 512 keeps the
    # double-buffered bf16 A tiles a few MiB -- safe for v7x's 64 MiB VMEM).
    bn = min(block, _round_up(n, 128))
    n_pad = _round_up(n, bn)

    if n_pad != n:
        # Zero padding is exact: padded A rows/cols contribute nothing and the
        # padded output rows are sliced away below.
        a_bf16 = jnp.pad(a_bf16, ((0, n_pad - n), (0, n_pad - n)))
        z_bf16 = jnp.pad(z_bf16, ((0, n_pad - n), (0, 0)))

    grid = (n_pad // bn, n_pad // bn)  # (output row tiles, contraction tiles)

    out = pl.pallas_call(
        _gcn_aggregate_kernel,
        out_shape=jax.ShapeDtypeStruct((n_pad, f), jnp.float32),
        grid_spec=pltpu.PrefetchScalarGridSpec(
            num_scalar_prefetch=0,
            grid=grid,
            in_specs=[
                pl.BlockSpec((bn, bn), lambda i, k: (i, k)),  # A_hat tile
                pl.BlockSpec((bn, f), lambda i, k: (k, 0)),   # Z tile
                pl.BlockSpec((1, f), lambda i, k: (0, 0)),    # bias (resident)
            ],
            out_specs=pl.BlockSpec((bn, f), lambda i, k: (i, 0)),
            scratch_shapes=[pltpu.VMEM((bn, f), jnp.float32)],
        ),
        compiler_params=pltpu.CompilerParams(
            dimension_semantics=("parallel", "arbitrary"),
            vmem_limit_bytes=32 * 1024 * 1024,
        ),
    )(a_bf16, z_bf16, bias_f32)

    return out[:n] if n_pad != n else out


@functools.partial(jax.jit, static_argnames=("block",))
def gnn_forward(a_hat, x, w1, b1, w2, b2, w3, b3, pool, wf, bf, *, block=512):
    # Cast the dominant [N, N] operand to bf16 once; reused by all three layers.
    a_bf16 = a_hat.astype(jnp.bfloat16)

    h = x
    for w, b in ((w1, b1), (w2, b2), (w3, b3)):
        # Tiny feature transform (K = 2 / 32 / 64) hoisted to XLA per review.
        z = jnp.dot(h, w, preferred_element_type=jnp.float32)
        # O(N^2) aggregation + bias + ReLU in the Pallas kernel.
        h = gcn_aggregate(a_bf16, z.astype(jnp.bfloat16), b, block=block)
        # TODO(synk): Dropout(p=0.4) -> identity (eval-mode semantics).

    # global_mean_pool + fc hoisted to XLA (lane dim 1 output; negligible FLOPs).
    pooled = jnp.dot(pool, h)          # [G, 32]
    return jnp.dot(pooled, wf) + bf    # [G, 1]


def build_normalized_adjacency(edge_index, num_nodes):
    """Dense GCN adjacency: D^-1/2 (A + I) D^-1/2 (matches GCNConv defaults)."""
    src, dst = edge_index
    adj = jnp.zeros((num_nodes, num_nodes), jnp.float32)
    adj = adj.at[dst, src].add(1.0)                      # messages flow src -> dst
    adj = adj + jnp.eye(num_nodes, dtype=jnp.float32)    # add self loops
    deg = adj.sum(axis=1)
    dinv = jnp.where(deg > 0, jax.lax.rsqrt(deg), 0.0)
    return dinv[:, None] * adj * dinv[None, :]


def build_mean_pool_matrix(batch, num_graphs, num_nodes):
    onehot = (batch[None, :] == jnp.arange(num_graphs)[:, None]).astype(jnp.float32)
    counts = onehot.sum(axis=1, keepdims=True)
    return onehot / jnp.maximum(counts, 1.0)


if __name__ == "__main__":
    key = jax.random.PRNGKey(0)
    ks = jax.random.split(key, 9)

    # Small synthetic batch: 4 graphs x 64 nodes (N=256 -> exercises a 2x2 tile
    # grid per layer at block=128), node feature dim = 2.
    num_graphs, nodes_per_graph = 4, 64
    N = num_graphs * nodes_per_graph
    F_in, H1, H2, H3 = 2, 32, 64, 32

    # Undirected chain inside each graph.
    src, dst = [], []
    for g in range(num_graphs):
        base = g * nodes_per_graph
        for i in range(nodes_per_graph - 1):
            src += [base + i, base + i + 1]
            dst += [base + i + 1, base + i]
    edge_index = jnp.array([src, dst], dtype=jnp.int32)
    batch = jnp.repeat(jnp.arange(num_graphs, dtype=jnp.int32), nodes_per_graph)

    x = jax.random.normal(ks[0], (N, F_in), jnp.float32)

    # Deterministic parameter init (GCNConv weight [in,out] + bias, Linear [32,1] + bias).
    w1 = jax.random.normal(ks[1], (F_in, H1), jnp.float32) * 0.2
    b1 = jax.random.normal(ks[2], (1, H1), jnp.float32) * 0.1
    w2 = jax.random.normal(ks[3], (H1, H2), jnp.float32) * 0.2
    b2 = jax.random.normal(ks[4], (1, H2), jnp.float32) * 0.1
    w3 = jax.random.normal(ks[5], (H2, H3), jnp.float32) * 0.2
    b3 = jax.random.normal(ks[6], (1, H3), jnp.float32) * 0.1
    wf = jax.random.normal(ks[7], (H3, 1), jnp.float32) * 0.2
    bf = jax.random.normal(ks[8], (1, 1), jnp.float32) * 0.1

    a_hat = build_normalized_adjacency(edge_index, N)
    pool = build_mean_pool_matrix(batch, num_graphs, N)

    out = gnn_forward(a_hat, x, w1, b1, w2, b2, w3, b3, pool, wf, bf, block=128)
    out = jax.block_until_ready(out)

    # Pure-JAX reference with the same bf16 MXU casts as the kernel.
    def reference():
        a_bf = a_hat.astype(jnp.bfloat16)
        h = x
        for w, b in ((w1, b1), (w2, b2), (w3, b3)):
            z = jnp.dot(h, w, preferred_element_type=jnp.float32).astype(jnp.bfloat16)
            h = jnp.maximum(
                jnp.dot(a_bf, z, preferred_element_type=jnp.float32) + b, 0.0)
        return jnp.dot(pool, h) @ wf + bf

    ref = jax.block_until_ready(reference())
    assert out.shape == (num_graphs, 1)
    assert jnp.allclose(out, ref, atol=2e-3, rtol=2e-3), "mismatch vs reference"

    print("KERNEL_OK")
</pallas_src>

<mosaic_0001>
module attributes {stable_mosaic.version = 11 : i64} {
  func.func @_gcn_aggregate_kernel(%arg0: i32, %arg1: i32, %arg2: memref<128x128xbf16, #tpu.memory_space<vmem>>, %arg3: memref<128x32xbf16, #tpu.memory_space<vmem>>, %arg4: memref<1x32xf32, #tpu.memory_space<vmem>>, %arg5: memref<128x32xf32, #tpu.memory_space<vmem>>, %arg6: memref<128x32xf32, #tpu.memory_space<vmem>>) attributes {dimension_semantics = [#tpu.dimension_semantics<parallel>, #tpu.dimension_semantics<arbitrary>], iteration_bounds = array<i64: 2, 2>, scalar_prefetch = 0 : i64, scratch_operands = 1 : i64, tpu.core_type = #tpu.core_type<tc>, window_params = [{transform_indices = @transform_0, window_bounds = array<i64: 128, 128>}, {transform_indices = @transform_1, window_bounds = array<i64: 128, 32>}, {pipeline_mode = #tpu.pipeline_mode<synchronous>, transform_indices = @transform_2, window_bounds = array<i64: 1, 32>}, {transform_indices = @transform_3, window_bounds = array<i64: 128, 32>}]} {
    %c0_i32 = arith.constant 0 : i32
    %0 = arith.cmpi eq, %arg1, %c0_i32 : i32
    %1 = arith.extui %0 : i1 to i32
    %c0_i32_0 = arith.constant 0 : i32
    %2 = arith.cmpi ne, %1, %c0_i32_0 : i32
    scf.if %2 {
      %cst_9 = arith.constant 0.000000e+00 : f32
      %12 = vector.broadcast %cst_9 : f32 to vector<128x32xf32>
      %c0_10 = arith.constant 0 : index
      %c0_11 = arith.constant 0 : index
      %13 = vector.load %arg6[%c0_10, %c0_11] : memref<128x32xf32, #tpu.memory_space<vmem>>, vector<128x32xf32>
      tpu.vector_store %arg6[%c0_10, %c0_11], %12 {strides = array<i32>} : memref<128x32xf32, #tpu.memory_space<vmem>>, vector<128x32xf32>,
    } else {
    }
    %c0 = arith.constant 0 : index
    %c0_1 = arith.constant 0 : index
    %3 = vector.load %arg6[%c0, %c0_1] : memref<128x32xf32, #tpu.memory_space<vmem>>, vector<128x32xf32>
    %c0_2 = arith.constant 0 : index
    %c0_3 = arith.constant 0 : index
    %4 = vector.load %arg2[%c0_2, %c0_3] : memref<128x128xbf16, #tpu.memory_space<vmem>>, vector<128x128xbf16>
    %c0_4 = arith.constant 0 : index
    %c0_5 = arith.constant 0 : index
    %5 = vector.load %arg3[%c0_4, %c0_5] : memref<128x32xbf16, #tpu.memory_space<vmem>>, vector<128x32xbf16>
    %cst = arith.constant dense<0.000000e+00> : vector<128x32xf32>
    %6 = tpu.matmul %4, %5, %cst {dimension_numbers = #tpu.dot_dimension_numbers<[1], [0], [0], [1], [0, 0, 1, 1], [], []>} : vector<128x128xbf16>, vector<128x32xbf16>, vector<128x32xf32> -> vector<128x32xf32>
    %7 = arith.addf %3, %6 : vector<128x32xf32>
    %c0_6 = arith.constant 0 : index
    %c0_7 = arith.constant 0 : index
    %8 = vector.load %arg6[%c0_6, %c0_7] : memref<128x32xf32, #tpu.memory_space<vmem>>, vector<128x32xf32>
    tpu.vector_store %arg6[%c0_6, %c0_7], %7 {strides = array<i32>} : memref<128x32xf32, #tpu.memory_space<vmem>>, vector<128x32xf32>,
    %c1_i32 = arith.constant 1 : i32
    %9 = arith.cmpi eq, %arg1, %c1_i32 : i32
    %10 = arith.extui %9 : i1 to i32
    %c0_i32_8 = arith.constant 0 : i32
    %11 = arith.cmpi ne, %10, %c0_i32_8 : i32
    scf.if %11 {
      %c0_9 = arith.constant 0 : index
      %c0_10 = arith.constant 0 : index
      %12 = vector.load %arg6[%c0_9, %c0_10] : memref<128x32xf32, #tpu.memory_space<vmem>>, vector<128x32xf32>
      %c0_11 = arith.constant 0 : index
      %c0_12 = arith.constant 0 : index
      %13 = vector.load %arg4[%c0_11, %c0_12] : memref<1x32xf32, #tpu.memory_space<vmem>>, vector<1x32xf32>
      %14 = vector.broadcast %13 : vector<1x32xf32> to vector<128x32xf32>
      %15 = arith.addf %12, %14 : vector<128x32xf32>
      %cst_13 = arith.constant 0.000000e+00 : f32
      %16 = vector.broadcast %cst_13 : f32 to vector<128x32xf32>
      %17 = arith.maximumf %15, %16 : vector<128x32xf32>
      %c0_14 = arith.constant 0 : index
      %c0_15 = arith.constant 0 : index
      %18 = vector.load %arg5[%c0_14, %c0_15] : memref<128x32xf32, #tpu.memory_space<vmem>>, vector<128x32xf32>
      tpu.vector_store %arg5[%c0_14, %c0_15], %17 {strides = array<i32>} : memref<128x32xf32, #tpu.memory_space<vmem>>, vector<128x32xf32>,
    } else {
    }
    return
  }
  func.func @transform_0(%arg0: i32, %arg1: i32) -> (i32, i32) {
    %c0_i32 = arith.constant 0 : i32
    return %arg0, %arg1 : i32, i32
  }
  func.func @transform_1(%arg0: i32, %arg1: i32) -> (i32, i32) {
    %c0_i32 = arith.constant 0 : i32
    %c0_i32_0 = arith.constant 0 : i32
    return %arg1, %c0_i32 : i32, i32
  }
  func.func @transform_2(%arg0: i32, %arg1: i32) -> (i32, i32) {
    %c0_i32 = arith.constant 0 : i32
    %c0_i32_0 = arith.constant 0 : i32
    %c0_i32_1 = arith.constant 0 : i32
    return %c0_i32, %c0_i32_0 : i32, i32
  }
  func.func @transform_3(%arg0: i32, %arg1: i32) -> (i32, i32) {
    %c0_i32 = arith.constant 0 : i32
    %c0_i32_0 = arith.constant 0 : i32
    return %arg0, %c0_i32 : i32, i32
  }
}

module attributes {stable_mosaic.version = 11 : i64} {
  func.func @_gcn_aggregate_kernel(%arg0: i32, %arg1: i32, %arg2: memref<128x128xbf16, #tpu.memory_space<vmem>>, %arg3: memref<128x64xbf16, #tpu.memory_space<vmem>>, %arg4: memref<1x64xf32, #tpu.memory_space<vmem>>, %arg5: memref<128x64xf32, #tpu.memory_space<vmem>>, %arg6: memref<128x64xf32, #tpu.memory_space<vmem>>) attributes {dimension_semantics = [#tpu.dimension_semantics<parallel>, #tpu.dimension_semantics<arbitrary>], iteration_bounds = array<i64: 2, 2>, scalar_prefetch = 0 : i64, scratch_operands = 1 : i64, tpu.core_type = #tpu.core_type<tc>, window_params = [{transform_indices = @transform_0, window_bounds = array<i64: 128, 128>}, {transform_indices = @transform_1, window_bounds = array<i64: 128, 64>}, {pipeline_mode = #tpu.pipeline_mode<synchronous>, transform_indices = @transform_2, window_bounds = array<i64: 1, 64>}, {transform_indices = @transform_3, window_bounds = array<i64: 128, 64>}]} {
    %c0_i32 = arith.constant 0 : i32
    %0 = arith.cmpi eq, %arg1, %c0_i32 : i32
    %1 = arith.extui %0 : i1 to i32
    %c0_i32_0 = arith.constant 0 : i32
    %2 = arith.cmpi ne, %1, %c0_i32_0 : i32
    scf.if %2 {
      %cst_9 = arith.constant 0.000000e+00 : f32
      %12 = vector.broadcast %cst_9 : f32 to vector<128x64xf32>
      %c0_10 = arith.constant 0 : index
      %c0_11 = arith.constant 0 : index
      %13 = vector.load %arg6[%c0_10, %c0_11] : memref<128x64xf32, #tpu.memory_space<vmem>>, vector<128x64xf32>
      tpu.vector_store %arg6[%c0_10, %c0_11], %12 {strides = array<i32>} : memref<128x64xf32, #tpu.memory_space<vmem>>, vector<128x64xf32>,
    } else {
    }
    %c0 = arith.constant 0 : index
    %c0_1 = arith.constant 0 : index
    %3 = vector.load %arg6[%c0, %c0_1] : memref<128x64xf32, #tpu.memory_space<vmem>>, vector<128x64xf32>
    %c0_2 = arith.constant 0 : index
    %c0_3 = arith.constant 0 : index
    %4 = vector.load %arg2[%c0_2, %c0_3] : memref<128x128xbf16, #tpu.memory_space<vmem>>, vector<128x128xbf16>
    %c0_4 = arith.constant 0 : index
    %c0_5 = arith.constant 0 : index
    %5 = vector.load %arg3[%c0_4, %c0_5] : memref<128x64xbf16, #tpu.memory_space<vmem>>, vector<128x64xbf16>
    %cst = arith.constant dense<0.000000e+00> : vector<128x64xf32>
    %6 = tpu.matmul %4, %5, %cst {dimension_numbers = #tpu.dot_dimension_numbers<[1], [0], [0], [1], [0, 0, 1, 1], [], []>} : vector<128x128xbf16>, vector<128x64xbf16>, vector<128x64xf32> -> vector<128x64xf32>
    %7 = arith.addf %3, %6 : vector<128x64xf32>
    %c0_6 = arith.constant 0 : index
    %c0_7 = arith.constant 0 : index
    %8 = vector.load %arg6[%c0_6, %c0_7] : memref<128x64xf32, #tpu.memory_space<vmem>>, vector<128x64xf32>
    tpu.vector_store %arg6[%c0_6, %c0_7], %7 {strides = array<i32>} : memref<128x64xf32, #tpu.memory_space<vmem>>, vector<128x64xf32>,
    %c1_i32 = arith.constant 1 : i32
    %9 = arith.cmpi eq, %arg1, %c1_i32 : i32
    %10 = arith.extui %9 : i1 to i32
    %c0_i32_8 = arith.constant 0 : i32
    %11 = arith.cmpi ne, %10, %c0_i32_8 : i32
    scf.if %11 {
      %c0_9 = arith.constant 0 : index
      %c0_10 = arith.constant 0 : index
      %12 = vector.load %arg6[%c0_9, %c0_10] : memref<128x64xf32, #tpu.memory_space<vmem>>, vector<128x64xf32>
      %c0_11 = arith.constant 0 : index
      %c0_12 = arith.constant 0 : index
      %13 = vector.load %arg4[%c0_11, %c0_12] : memref<1x64xf32, #tpu.memory_space<vmem>>, vector<1x64xf32>
      %14 = vector.broadcast %13 : vector<1x64xf32> to vector<128x64xf32>
      %15 = arith.addf %12, %14 : vector<128x64xf32>
      %cst_13 = arith.constant 0.000000e+00 : f32
      %16 = vector.broadcast %cst_13 : f32 to vector<128x64xf32>
      %17 = arith.maximumf %15, %16 : vector<128x64xf32>
      %c0_14 = arith.constant 0 : index
      %c0_15 = arith.constant 0 : index
      %18 = vector.load %arg5[%c0_14, %c0_15] : memref<128x64xf32, #tpu.memory_space<vmem>>, vector<128x64xf32>
      tpu.vector_store %arg5[%c0_14, %c0_15], %17 {strides = array<i32>} : memref<128x64xf32, #tpu.memory_space<vmem>>, vector<128x64xf32>,
    } else {
    }
    return
  }
  func.func @transform_0(%arg0: i32, %arg1: i32) -> (i32, i32) {
    %c0_i32 = arith.constant 0 : i32
    return %arg0, %arg1 : i32, i32
  }
  func.func @transform_1(%arg0: i32, %arg1: i32) -> (i32, i32) {
    %c0_i32 = arith.constant 0 : i32
    %c0_i32_0 = arith.constant 0 : i32
    return %arg1, %c0_i32 : i32, i32
  }
  func.func @transform_2(%arg0: i32, %arg1: i32) -> (i32, i32) {
    %c0_i32 = arith.constant 0 : i32
    %c0_i32_0 = arith.constant 0 : i32
    %c0_i32_1 = arith.constant 0 : i32
    return %c0_i32, %c0_i32_0 : i32, i32
  }
  func.func @transform_3(%arg0: i32, %arg1: i32) -> (i32, i32) {
    %c0_i32 = arith.constant 0 : i32
    %c0_i32_0 = arith.constant 0 : i32
    return %arg0, %c0_i32 : i32, i32
  }
}

</mosaic_0001>

<llo_original>
// kernel: gnn_forward.4
$region0: #{gnn_forward.4}
  #allocation0 [shape = 'u32[]', space=smem, size = 0x4, offset = 0x4, fixed_abs, tag = 'smem constant byte address 0x4 - core index']
  #allocation1 [shape = 'u32[144,128]{1,0:T(1,128)}', space=vmem, size = 0x12000, scoped, tag = 'internal scratch']
  #allocation2 [shape = 'f32[128,64]{1,0:T(8,128)}', space=vmem, size = 0x10000, scoped, tag = 'scratch operand']
  %s0 = inlined_call_operand.vmem [shape: bf16[256,256], index: 0, kind: input, shape index: {}]
  %s1 = inlined_call_operand.vmem [shape: bf16[256,64], index: 1, kind: input, shape index: {}]
  %s2 = inlined_call_operand.vmem [shape: f32[1,64], index: 2, kind: input, shape index: {}]
  %s3 = inlined_call_operand.vmem [shape: f32[256,64], index: 3, kind: output, shape index: {}]
  %s4 = sld [smem:[#allocation0]]
  $region94: #{gnn_forward.4} parent=0
    _
  %s6 = ssub.s32 1, %s4
  %s7 = scalar_select 0, %s6, %s4
  $region1: #{gnn_forward.4} parent=0
    #allocation3 [shape = 'u8[65536]{0}', space=vmem, size = 0x10000, scoped, tag = 'input window, operand 0']
    loop: start=0, step=1, limit=6
    $region2: #{gnn_forward.4} parent=1 // loop_pre_header
      _
    $region3: #{gnn_forward.4} parent=1 // loop_header
      %s9 = sphi 0, %s13
      %p10 = scmp.ge.s32.totalorder %s9, 6
      %s16 = sphi 0, %s28
      %s17 = sphi 0, %s24
      %s18 = sphi 0, %s16
      %s19 = sphi 0, %s17
      %s20 = sphi 0, %s18
      %s21 = sphi 0, %s19
      %s33 = sphi 0, %s35
      %s36 = sphi 0, %s33
      %s37 = sphi 0, %s36
      %s53 = sphi 0, %s37
      %s59 = sphi 0, %s61
      %s62 = sphi 0, %s59
      %s63 = sphi 0, %s62
      %s79 = sphi 0, %s63
      %s83 = sphi 0, %s83
      %s85 = sphi 0, %s83
      %s86 = sphi 0, %s85
      %s100 = sphi 0, %s86
      %s106 = sphi 0, %s108
      %s109 = sphi 0, %s106
      %s110 = sphi 0, %s109
      %s126 = sphi 0, %s110
    $region4: #{gnn_forward.4} parent=1 // loop_header_branch
      %12 = sbr.rel (%p10) target = $region8
    $region5: #{gnn_forward.4} parent=1 // loop_body
      %s14 = ssub.s32 %s9, 1
      %s15 = ssub.s32 %s9, 2
      %s22 = sadd.s32 1, %s17
      %p23 = scmp.ge.s32.totalorder %s22, 2
      %s24 = scalar_select %p23, 0, %s22
      %s25 = sadd.s32 1, %s16
      %s26 = scalar_select %p23, %s25, %s16
      %p27 = scmp.ge.s32.totalorder %s26, 2
      %s28 = scalar_select %p27, 0, %s26
      %s29 = ssub.s32 %s16, %s28
      %s30 = ssub.s32 %s17, %s24
      %s31 = sor.u32 %s29, %s30
      %p32 = scmp.eq.s32.totalorder %s31, 0
      %s34 = sadd.s32 %s33, 1
      %s35 = scalar_select %p32, %s33, %s34
      %p38 = pneg %p32
      %p39 = scmp.eq.s32.totalorder %s9, 3
      %p40 = por %p38, %p39
      %p41 = scmp.ne.s32.totalorder %s33, %s36
      %p42 = scmp.eq.s32.totalorder %s9, 0
      %p43 = por %p41, %p42
      %p44 = scmp.ne.s32.totalorder %s33, %s36
      %p45 = scmp.eq.s32.totalorder %s14, 3
      %p46 = por %p44, %p45
      %p47 = scmp.ne.s32.totalorder %s36, %s37
      %p48 = scmp.eq.s32.totalorder %s14, 0
      %p49 = por %p47, %p48
      %p50 = scmp.ne.s32.totalorder %s36, %s37
      %p51 = scmp.eq.s32.totalorder %s15, 3
      %p52 = por %p50, %p51
      %p54 = scmp.ne.s32.totalorder %s37, %s53
      %p55 = scmp.eq.s32.totalorder %s15, 0
      %p56 = por %p54, %p55
      %s57 = ssub.s32 %s17, %s24
      %p58 = scmp.eq.s32.totalorder %s57, 0
      %s60 = sadd.s32 %s59, 1
      %s61 = scalar_select %p58, %s59, %s60
      %p64 = pneg %p58
      %p65 = scmp.eq.s32.totalorder %s9, 3
      %p66 = por %p64, %p65
      %p67 = scmp.ne.s32.totalorder %s59, %s62
      %p68 = scmp.eq.s32.totalorder %s9, 0
      %p69 = por %p67, %p68
      %p70 = scmp.ne.s32.totalorder %s59, %s62
      %p71 = scmp.eq.s32.totalorder %s14, 3
      %p72 = por %p70, %p71
      %p73 = scmp.ne.s32.totalorder %s62, %s63
      %p74 = scmp.eq.s32.totalorder %s14, 0
      %p75 = por %p73, %p74
      %p76 = scmp.ne.s32.totalorder %s62, %s63
      %p77 = scmp.eq.s32.totalorder %s15, 3
      %p78 = por %p76, %p77
      %p80 = scmp.ne.s32.totalorder %s63, %s79
      %p81 = scmp.eq.s32.totalorder %s15, 0
      %p82 = por %p80, %p81
      %s84 = sadd.s32 %s83, 1
      %p87 = scmp.eq.s32.totalorder %s9, 3
      %p88 = scmp.ne.s32.totalorder %s83, %s85
      %p89 = scmp.eq.s32.totalorder %s9, 0
      %p90 = por %p88, %p89
      %p91 = scmp.ne.s32.totalorder %s83, %s85
      %p92 = scmp.eq.s32.totalorder %s14, 3
      %p93 = por %p91, %p92
      %p94 = scmp.ne.s32.totalorder %s85, %s86
      %p95 = scmp.eq.s32.totalorder %s14, 0
      %p96 = por %p94, %p95
      %p97 = scmp.ne.s32.totalorder %s85, %s86
      %p98 = scmp.eq.s32.totalorder %s15, 3
      %p99 = por %p97, %p98
      %p101 = scmp.ne.s32.totalorder %s86, %s100
      %p102 = scmp.eq.s32.totalorder %s15, 0
      %p103 = por %p101, %p102
      %s104 = ssub.s32 %s16, %s28
      %p105 = scmp.eq.s32.totalorder %s104, 0
      %s107 = sadd.s32 %s106, 1
      %s108 = scalar_select %p105, %s106, %s107
      %p111 = pneg %p105
      %p112 = scmp.eq.s32.totalorder %s9, 3
      %p113 = por %p111, %p112
      %p114 = scmp.ne.s32.totalorder %s106, %s109
      %p115 = scmp.eq.s32.totalorder %s9, 0
      %p116 = por %p114, %p115
      %p117 = scmp.ne.s32.totalorder %s106, %s109
      %p118 = scmp.eq.s32.totalorder %s14, 3
      %p119 = por %p117, %p118
      %p120 = scmp.ne.s32.totalorder %s109, %s110
      %p121 = scmp.eq.s32.totalorder %s14, 0
      %p122 = por %p120, %p121
      %p123 = scmp.ne.s32.totalorder %s109, %s110
      %p124 = scmp.eq.s32.totalorder %s15, 3
      %p125 = por %p123, %p124
      %p127 = scmp.ne.s32.totalorder %s110, %s126
      %p128 = scmp.eq.s32.totalorder %s15, 0
      %p129 = por %p127, %p128
      %p130 = scmp.le.s32.totalorder 1, %s9
      %p131 = scmp.lt.s32.totalorder %s9, 5
      %p132 = pnand %p130, %p131
      %p133 = pneg %p132
      // Predicated region
      $region9: #{gnn_forward.4} parent=5 // pred_check
        _
      $region10: #{gnn_forward.4} parent=5 // pred_check_branch
        %135 = sbr.rel (%p132) target = $region12
      $region11: #{gnn_forward.4} parent=5 // pred_region
        %s136 = ssub.s32 %s9, 1
        // Predicated region
        $region13: #{gnn_forward.4} parent=11 // pred_check
          %p137 = pneg %p96
        $region14: #{gnn_forward.4} parent=11 // pred_check_branch
          %139 = sbr.rel (%p137) target = $region16
        $region15: #{gnn_forward.4} parent=11 // pred_region
          _
        $region16: #{gnn_forward.4} parent=11 // pred_fallthru
          _
      $region12: #{gnn_forward.4} parent=5 // pred_fallthru
        _
      %p140 = scmp.lt.s32.totalorder %s9, 4
      // Predicated region
      $region17: #{gnn_forward.4} parent=5 // pred_check
        %p141 = pneg %p140
      $region18: #{gnn_forward.4} parent=5 // pred_check_branch
        %143 = sbr.rel (%p141) target = $region20
      $region19: #{gnn_forward.4} parent=5 // pred_region
        // Predicated region
        $region21: #{gnn_forward.4} parent=19 // pred_check
          %p144 = pneg %p43
        $region22: #{gnn_forward.4} parent=19 // pred_check_branch
          %146 = sbr.rel (%p144) target = $region24
        $region23: #{gnn_forward.4} parent=19 // pred_region
          %s147 = sand.u32 %s33, 1
          %s148 = sand.u32 %s33, 1
          %s149 = smul.addr %s148, 64
          %s150 = scalar_lea.vmem [#allocation3], %s149
          %s151 = smul.u32 16, %s16
          %s152 = smul.addr %s151, 2
          %s153 = sadd.s32 %s17, %s152
          %s154 = smul.addr %s153, 4
          %s155 = scalar_lea.vmem %s0, %s154
          // Predicated region
          $region25: #{gnn_forward.4} parent=23 // pred_check
            _
          $region26: #{gnn_forward.4} parent=23 // pred_check_branch
            %157 = sbr.rel (0) target = $region28
          $region27: #{gnn_forward.4} parent=23 // pred_region
            // Predicated region
            $region29: #{gnn_forward.4} parent=27 // pred_check
              _
            $region30: #{gnn_forward.4} parent=27 // pred_check_branch
              %159 = sbr.rel target = $region32
            $region31: #{gnn_forward.4} parent=27 // pred_region
              // Predicated region
              $region44: #{gnn_forward.4} parent=31 // pred_check
                _
              $region45: #{gnn_forward.4} parent=31 // pred_check_branch
                %205 = sbr.rel (0) target = $region47
              $region46: #{gnn_forward.4} parent=31 // pred_region
                loop: start=0, step=1, limit=1
                $region48: #{gnn_forward.4} parent=46 // loop_pre_header
                  _
                $region49: #{gnn_forward.4} parent=46 // loop_header
                  %s207 = sphi 0, %s211
                  %p208 = scmp.ge.s32.totalorder %s207, 1
                  %s212 = sphi %s155, %s155
                  %s213 = sphi %s150, %s150
                $region50: #{gnn_forward.4} parent=46 // loop_header_branch
                  %210 = sbr.rel (%p208) target = $region54
                $region51: #{gnn_forward.4} parent=46 // loop_body
                  _
                $region52: #{gnn_forward.4} parent=46 // loop_footer
                  %s211 = sadd.s32 1, %s207
                $region53: #{gnn_forward.4} parent=46 // loop_footer_branch
                  %206 = sbr.rel target = $region49
                $region54: #{gnn_forward.4} parent=46 // loop_exit
                  _
                %s215 = ssub.s32 16, 1
                loop: start=0, step=1, limit=1
                $region55: #{gnn_forward.4} parent=46 // loop_pre_header
                  _
                $region56: #{gnn_forward.4} parent=46 // loop_header
                  %s217 = sphi 0, %s221
                  %p218 = scmp.ge.s32.totalorder %s217, 1
                  %s222 = sphi %s155, %s155
                  %s223 = sphi %s150, %s150
                $region57: #{gnn_forward.4} parent=46 // loop_header_branch
                  %220 = sbr.rel (%p218) target = $region61
                $region58: #{gnn_forward.4} parent=46 // loop_body
                  %v224 = vld [vmem:[%s222] sm:%s215]
                  %225 = vst [vmem:[%s223] sm:%s215] %v224
                  %v226 = vld [vmem:[%s222 + $0x8] sm:%s215]
                  %227 = vst [vmem:[%s223 + $0x4] sm:%s215] %v226
                  %v228 = vld [vmem:[%s222 + $0x10] sm:%s215]
                  %229 = vst [vmem:[%s223 + $0x8] sm:%s215] %v228
                  %v230 = vld [vmem:[%s222 + $0x18] sm:%s215]
                  %231 = vst [vmem:[%s223 + $0xc] sm:%s215] %v230
                  %v232 = vld [vmem:[%s222 + $0x20] sm:%s215]
                  %233 = vst [vmem:[%s223 + $0x10] sm:%s215] %v232
                  %v234 = vld [vmem:[%s222 + $0x28] sm:%s215]
                  %235 = vst [vmem:[%s223 + $0x14] sm:%s215] %v234
                  %v236 = vld [vmem:[%s222 + $0x30] sm:%s215]
                  %237 = vst [vmem:[%s223 + $0x18] sm:%s215] %v236
                  %v238 = vld [vmem:[%s222 + $0x38] sm:%s215]
                  %239 = vst [vmem:[%s223 + $0x1c] sm:%s215] %v238
                  %v240 = vld [vmem:[%s222 + $0x40] sm:%s215]
                  %241 = vst [vmem:[%s223 + $0x20] sm:%s215] %v240
                  %v242 = vld [vmem:[%s222 + $0x48] sm:%s215]
                  %243 = vst [vmem:[%s223 + $0x24] sm:%s215] %v242
                  %v244 = vld [vmem:[%s222 + $0x50] sm:%s215]
                  %245 = vst [vmem:[%s223 + $0x28] sm:%s215] %v244
                  %v246 = vld [vmem:[%s222 + $0x58] sm:%s215]
                  %247 = vst [vmem:[%s223 + $0x2c] sm:%s215] %v246
                  %v248 = vld [vmem:[%s222 + $0x60] sm:%s215]
                  %249 = vst [vmem:[%s223 + $0x30] sm:%s215] %v248
                  %v250 = vld [vmem:[%s222 + $0x68] sm:%s215]
                  %251 = vst [vmem:[%s223 + $0x34] sm:%s215] %v250
                  %v252 = vld [vmem:[%s222 + $0x70] sm:%s215]
                  %253 = vst [vmem:[%s223 + $0x38] sm:%s215] %v252
                  %v254 = vld [vmem:[%s222 + $0x78] sm:%s215]
                  %255 = vst [vmem:[%s223 + $0x3c] sm:%s215] %v254
                $region59: #{gnn_forward.4} parent=46 // loop_footer
                  %s221 = sadd.s32 1, %s217
                $region60: #{gnn_forward.4} parent=46 // loop_footer_branch
                  %216 = sbr.rel target = $region56
                $region61: #{gnn_forward.4} parent=46 // loop_exit
                  _
              $region47: #{gnn_forward.4} parent=31 // pred_fallthru
                _
            $region32: #{gnn_forward.4} parent=27 // pred_fallthru
              _
            // Predicated region
            $region33: #{gnn_forward.4} parent=27 // pred_check
              _
            $region34: #{gnn_forward.4} parent=27 // pred_check_branch
              %161 = sbr.rel (0) target = $region36
            $region35: #{gnn_forward.4} parent=27 // pred_region
              %s163 = ssub.s32 16, 1
              loop: start=0, step=1, limit=1
              $region37: #{gnn_forward.4} parent=35 // loop_pre_header
                _
              $region38: #{gnn_forward.4} parent=35 // loop_header
                %s165 = sphi 0, %s169
                %p166 = scmp.ge.s32.totalorder %s165, 1
                %s170 = sphi %s155, %s155
                %s171 = sphi %s150, %s150
              $region39: #{gnn_forward.4} parent=35 // loop_header_branch
                %168 = sbr.rel (%p166) target = $region43
              $region40: #{gnn_forward.4} parent=35 // loop_body
                %v172 = vld [vmem:[%s170] sm:%s163]
                %173 = vst [vmem:[%s171] sm:%s163] %v172
                %v174 = vld [vmem:[%s170 + $0x8] sm:%s163]
                %175 = vst [vmem:[%s171 + $0x4] sm:%s163] %v174
                %v176 = vld [vmem:[%s170 + $0x10] sm:%s163]
                %177 = vst [vmem:[%s171 + $0x8] sm:%s163] %v176
                %v178 = vld [vmem:[%s170 + $0x18] sm:%s163]
                %179 = vst [vmem:[%s171 + $0xc] sm:%s163] %v178
                %v180 = vld [vmem:[%s170 + $0x20] sm:%s163]
                %181 = vst [vmem:[%s171 + $0x10] sm:%s163] %v180
                %v182 = vld [vmem:[%s170 + $0x28] sm:%s163]
                %183 = vst [vmem:[%s171 + $0x14] sm:%s163] %v182
                %v184 = vld [vmem:[%s170 + $0x30] sm:%s163]
                %185 = vst [vmem:[%s171 + $0x18] sm:%s163] %v184
                %v186 = vld [vmem:[%s170 + $0x38] sm:%s163]
                %187 = vst [vmem:[%s171 + $0x1c] sm:%s163] %v186
                %v188 = vld [vmem:[%s170 + $0x40] sm:%s163]
                %189 = vst [vmem:[%s171 + $0x20] sm:%s163] %v188
                %v190 = vld [vmem:[%s170 + $0x48] sm:%s163]
                %191 = vst [vmem:[%s171 + $0x24] sm:%s163] %v190
                %v192 = vld [vmem:[%s170 + $0x50] sm:%s163]
                %193 = vst [vmem:[%s171 + $0x28] sm:%s163] %v192
                %v194 = vld [vmem:[%s170 + $0x58] sm:%s163]
                %195 = vst [vmem:[%s171 + $0x2c] sm:%s163] %v194
                %v196 = vld [vmem:[%s170 + $0x60] sm:%s163]
                %197 = vst [vmem:[%s171 + $0x30] sm:%s163] %v196
                %v198 = vld [vmem:[%s170 + $0x68] sm:%s163]
                %199 = vst [vmem:[%s171 + $0x34] sm:%s163] %v198
                %v200 = vld [vmem:[%s170 + $0x70] sm:%s163]
                %201 = vst [vmem:[%s171 + $0x38] sm:%s163] %v200
                %v202 = vld [vmem:[%s170 + $0x78] sm:%s163]
                %203 = vst [vmem:[%s171 + $0x3c] sm:%s163] %v202
              $region41: #{gnn_forward.4} parent=35 // loop_footer
                %s169 = sadd.s32 1, %s165
              $region42: #{gnn_forward.4} parent=35 // loop_footer_branch
                %164 = sbr.rel target = $region38
              $region43: #{gnn_forward.4} parent=35 // loop_exit
                _
            $region36: #{gnn_forward.4} parent=27 // pred_fallthru
              _
          $region28: #{gnn_forward.4} parent=23 // pred_fallthru
            _
          %256 = vnop
        $region24: #{gnn_forward.4} parent=19 // pred_fallthru
          _
        // Predicated region
        $region62: #{gnn_forward.4} parent=19 // pred_check
          %p257 = pneg %p69
        $region63: #{gnn_forward.4} parent=19 // pred_check_branch
          %259 = sbr.rel (%p257) target = $region65
        $region64: #{gnn_forward.4} parent=19 // pred_region
          %s260 = smul.u32 16, %s17
          %p261 = scmp.lt.s32.totalorder %s260, 31
          %s262 = scalar_select %p261, %s260, 31
          %s263 = smul.addr %s262, 4
          %s264 = scalar_lea.vmem %s1, %s263
          %s265 = smul.u32 16, %s17
        $region65: #{gnn_forward.4} parent=19 // pred_fallthru
          _
      $region20: #{gnn_forward.4} parent=5 // pred_fallthru
        _
      %p266 = scmp.le.s32.totalorder 1, %s9
      %p267 = scmp.lt.s32.totalorder %s9, 5
      %p268 = pnand %p266, %p267
      %p269 = pneg %p268
      // Predicated region
      $region66: #{gnn_forward.4} parent=5 // pred_check
        _
      $region67: #{gnn_forward.4} parent=5 // pred_check_branch
        %271 = sbr.rel (%p268) target = $region69
      $region68: #{gnn_forward.4} parent=5 // pred_region
        %s272 = ssub.s32 %s9, 1
        %s273 = sand.u32 %s36, 1
        %s274 = sand.u32 %s36, 1
        %s275 = smul.addr %s274, 64
        %s276 = scalar_lea.vmem [#allocation3], %s275
        // Predicated region
        $region70: #{gnn_forward.4} parent=68 // pred_check
          %p277 = pneg %p49
        $region71: #{gnn_forward.4} parent=68 // pred_check_branch
          %279 = sbr.rel (%p277) target = $region73
        $region72: #{gnn_forward.4} parent=68 // pred_region
          _
        $region73: #{gnn_forward.4} parent=68 // pred_fallthru
          _
        %s280 = sand.u32 %s36, 1
        %s281 = sand.u32 %s36, 1
        %s282 = smul.addr %s281, 64
        %s283 = scalar_lea.vmem [#allocation3], %s282
        %p284 = pneg %p49
        %p285 = pneg %p46
        %s286 = smul.u32 16, %s19
        %p287 = scmp.lt.s32.totalorder %s286, 31
        %s288 = scalar_select %p287, %s286, 31
        %s289 = smul.addr %s288, 4
        %s290 = scalar_lea.vmem %s1, %s289
        %p291 = pneg %p75
        %p292 = pneg %p72
        %p293 = pneg %p96
        %p294 = pneg %p93
        %p295 = pneg %p122
        %p296 = pneg %p119
        %s297 = smul.u32 16, %s18
        %p298 = scmp.lt.s32.totalorder %s297, 31
        %s299 = scalar_select %p298, %s297, 31
        %s300 = smul.addr %s299, 8
        %s301 = scalar_lea.vmem %s3, %s300
        %s302 = smul.u32 16, %s18
        %s303 = smul.u32 16, %s19
        %p304 = scmp.lt.s32.totalorder %s303, 31
        %s305 = scalar_select %p304, %s303, 31
        %s306 = smul.addr %s305, 4
        %s307 = scalar_lea.vmem %s1, %s306
        %s308 = smul.u32 16, %s19
        %s309 = smul.u32 16, %s18
        %p310 = scmp.lt.s32.totalorder %s309, 31
        %s311 = scalar_select %p310, %s309, 31
        %s312 = smul.addr %s311, 8
        %s313 = scalar_lea.vmem %s3, %s312
        %s314 = smul.u32 16, %s18
        %p316 = scmp.eq.s32.totalorder %s19, 0
        // Predicated region
        $region74: #{gnn_forward.4} parent=68 // pred_check
          %p317 = pneg %p316
        $region75: #{gnn_forward.4} parent=68 // pred_check_branch
          %319 = sbr.rel (%p317) target = $region77
        $region76: #{gnn_forward.4} parent=68 // pred_region
          %vm320 = vcmask 523264
          %321 = vst.msk [vmem:[#allocation2] sm:$0xff] %vm320, 0.0
          %322 = vst.msk [vmem:[#allocation2 + $0x8] sm:$0xff] %vm320, 0.0
          %323 = vst.msk [vmem:[#allocation2 + $0x10] sm:$0xff] %vm320, 0.0
          %324 = vst.msk [vmem:[#allocation2 + $0x18] sm:$0xff] %vm320, 0.0
          %325 = vst.msk [vmem:[#allocation2 + $0x20] sm:$0xff] %vm320, 0.0
          %326 = vst.msk [vmem:[#allocation2 + $0x28] sm:$0xff] %vm320, 0.0
          %327 = vst.msk [vmem:[#allocation2 + $0x30] sm:$0xff] %vm320, 0.0
          %328 = vst.msk [vmem:[#allocation2 + $0x38] sm:$0xff] %vm320, 0.0
          %329 = vst.msk [vmem:[#allocation2 + $0x40] sm:$0xff] %vm320, 0.0
          %330 = vst.msk [vmem:[#allocation2 + $0x48] sm:$0xff] %vm320, 0.0
          %331 = vst.msk [vmem:[#allocation2 + $0x50] sm:$0xff] %vm320, 0.0
          %332 = vst.msk [vmem:[#allocation2 + $0x58] sm:$0xff] %vm320, 0.0
          %333 = vst.msk [vmem:[#allocation2 + $0x60] sm:$0xff] %vm320, 0.0
          %334 = vst.msk [vmem:[#allocation2 + $0x68] sm:$0xff] %vm320, 0.0
          %335 = vst.msk [vmem:[#allocation2 + $0x70] sm:$0xff] %vm320, 0.0
          %336 = vst.msk [vmem:[#allocation2 + $0x78] sm:$0xff] %vm320, 0.0
        $region77: #{gnn_forward.4} parent=68 // pred_fallthru
          _
        %v337 = vld [vmem:[#allocation2] sm:$0xff]
        %v338 = vld [vmem:[#allocation2 + $0x8] sm:$0xff]
        %v339 = vld [vmem:[#allocation2 + $0x10] sm:$0xff]
        %v340 = vld [vmem:[#allocation2 + $0x18] sm:$0xff]
        %v341 = vld [vmem:[#allocation2 + $0x20] sm:$0xff]
        %v342 = vld [vmem:[#allocation2 + $0x28] sm:$0xff]
        %v343 = vld [vmem:[#allocation2 + $0x30] sm:$0xff]
        %v344 = vld [vmem:[#allocation2 + $0x38] sm:$0xff]
        %v345 = vld [vmem:[#allocation2 + $0x40] sm:$0xff]
        %v346 = vld [vmem:[#allocation2 + $0x48] sm:$0xff]
        %v347 = vld [vmem:[#allocation2 + $0x50] sm:$0xff]
        %v348 = vld [vmem:[#allocation2 + $0x58] sm:$0xff]
        %v349 = vld [vmem:[#allocation2 + $0x60] sm:$0xff]
        %v350 = vld [vmem:[#allocation2 + $0x68] sm:$0xff]
        %v351 = vld [vmem:[#allocation2 + $0x70] sm:$0xff]
        %v352 = vld [vmem:[#allocation2 + $0x78] sm:$0xff]
        %v353 = vld [vmem:[%s276] sm:$0xf]
        %v354 = vld [vmem:[%s276 + $0x4] sm:$0xf]
        %v355 = vld [vmem:[%s276 + $0x8] sm:$0xf]
        %v356 = vld [vmem:[%s276 + $0xc] sm:$0xf]
        %v357 = vld [vmem:[%s276 + $0x10] sm:$0xf]
        %v358 = vld [vmem:[%s276 + $0x14] sm:$0xf]
        %v359 = vld [vmem:[%s276 + $0x18] sm:$0xf]
        %v360 = vld [vmem:[%s276 + $0x1c] sm:$0xf]
        %v361 = vld [vmem:[%s276 + $0x20] sm:$0xf]
        %v362 = vld [vmem:[%s276 + $0x24] sm:$0xf]
        %v363 = vld [vmem:[%s276 + $0x28] sm:$0xf]
        %v364 = vld [vmem:[%s276 + $0x2c] sm:$0xf]
        %v365 = vld [vmem:[%s276 + $0x30] sm:$0xf]
        %v366 = vld [vmem:[%s276 + $0x34] sm:$0xf]
        %v367 = vld [vmem:[%s276 + $0x38] sm:$0xf]
        %v368 = vld [vmem:[%s276 + $0x3c] sm:$0xf]
        %v369 = vld [vmem:[%s307] sm:$0xf]
        %v370 = vld [vmem:[%s307 + $0x4] sm:$0xf]
        %v371 = vld [vmem:[%s307 + $0x8] sm:$0xf]
        %v372 = vld [vmem:[%s307 + $0xc] sm:$0xf]
        %v373 = vld [vmem:[%s307 + $0x10] sm:$0xf]
        %v374 = vld [vmem:[%s307 + $0x14] sm:$0xf]
        %v375 = vld [vmem:[%s307 + $0x18] sm:$0xf]
        %v376 = vld [vmem:[%s307 + $0x1c] sm:$0xf]
        %v377 = vld [vmem:[%s307 + $0x20] sm:$0xf]
        %v378 = vld [vmem:[%s307 + $0x24] sm:$0xf]
        %v379 = vld [vmem:[%s307 + $0x28] sm:$0xf]
        %v380 = vld [vmem:[%s307 + $0x2c] sm:$0xf]
        %v381 = vld [vmem:[%s307 + $0x30] sm:$0xf]
        %v382 = vld [vmem:[%s307 + $0x34] sm:$0xf]
        %v383 = vld [vmem:[%s307 + $0x38] sm:$0xf]
        %v384 = vld [vmem:[%s307 + $0x3c] sm:$0xf]
        %v401 = vunpack.c.l.b16 %v353
        %v402 = vunpack.c.l.b16 %v354
        %v403 = vunpack.c.l.b16 %v355
        %v404 = vunpack.c.l.b16 %v356
        %v405 = vunpack.c.l.b16 %v357
        %v406 = vunpack.c.l.b16 %v358
        %v407 = vunpack.c.l.b16 %v359
        %v408 = vunpack.c.l.b16 %v360
        %v409 = vunpack.c.l.b16 %v361
        %v410 = vunpack.c.l.b16 %v362
        %v411 = vunpack.c.l.b16 %v363
        %v412 = vunpack.c.l.b16 %v364
        %v413 = vunpack.c.l.b16 %v365
        %v414 = vunpack.c.l.b16 %v366
        %v415 = vunpack.c.l.b16 %v367
        %v416 = vunpack.c.l.b16 %v368
        %v417 = vpack.c.b16 %v402, %v401
        %v418 = vpack.c.b16 %v404, %v403
        %v419 = vpack.c.b16 %v406, %v405
        %v420 = vpack.c.b16 %v408, %v407
        %v421 = vpack.c.b16 %v410, %v409
        %v422 = vpack.c.b16 %v412, %v411
        %v423 = vpack.c.b16 %v414, %v413
        %v424 = vpack.c.b16 %v416, %v415
        %v449 = vunpack.c.l.b16 %v369
        %v450 = vunpack.c.l.b16 %v370
        %v451 = vunpack.c.l.b16 %v371
        %v452 = vunpack.c.l.b16 %v372
        %v453 = vunpack.c.l.b16 %v373
        %v454 = vunpack.c.l.b16 %v374
        %v455 = vunpack.c.l.b16 %v375
        %v456 = vunpack.c.l.b16 %v376
        %v457 = vunpack.c.l.b16 %v377
        %v458 = vunpack.c.l.b16 %v378
        %v459 = vunpack.c.l.b16 %v379
        %v460 = vunpack.c.l.b16 %v380
        %v461 = vunpack.c.l.b16 %v381
        %v462 = vunpack.c.l.b16 %v382
        %v463 = vunpack.c.l.b16 %v383
        %v464 = vunpack.c.l.b16 %v384
        %v465 = vpack.c.b16 %v450, %v449
        %v466 = vpack.c.b16 %v452, %v451
        %v467 = vpack.c.b16 %v454, %v453
        %v468 = vpack.c.b16 %v456, %v455
        %v469 = vpack.c.b16 %v458, %v457
        %v470 = vpack.c.b16 %v460, %v459
        %v471 = vpack.c.b16 %v462, %v461
        %v472 = vpack.c.b16 %v464, %v463
        %481 = vmatprep.subr.bf16.mxu0 0
        %482 = vmatpush1.bf16.msra.mxu0 %v472
        %483 = vmatprep.subr.bf16.mxu0 0
        %484 = vmatpush1.bf16.msra.mxu0 %v471
        %485 = vmatprep.subr.bf16.mxu0 0
        %486 = vmatpush1.bf16.msra.mxu0 %v470
        %487 = vmatprep.subr.bf16.mxu0 0
        %488 = vmatpush1.bf16.msra.mxu0 %v469
        %489 = vmatprep.subr.bf16.mxu0 0
        %490 = vmatpush1.bf16.msra.mxu0 %v468
        %491 = vmatprep.subr.bf16.mxu0 0
        %492 = vmatpush1.bf16.msra.mxu0 %v467
        %493 = vmatprep.subr.bf16.mxu0 0
        %494 = vmatpush1.bf16.msra.mxu0 %v466
        %495 = vmatprep.subr.bf16.mxu0 0
        %496 = vmatpush1.bf16.msra.mxu0 %v465
        %497 = vmatprep.subr.bf16.mxu0 0
        %498 = vmatpush2.bf16.msra.mxu0 0
        %499 = vmatprep.subr.bf16.mxu0 0
        %500 = vmatpush2.bf16.msra.mxu0 0
        %501 = vmatprep.subr.bf16.mxu0 0
        %502 = vmatpush2.bf16.msra.mxu0 0
        %503 = vmatprep.subr.bf16.mxu0 0
        %504 = vmatpush2.bf16.msra.mxu0 0
        %505 = vmatprep.subr.bf16.mxu0 0
        %506 = vmatpush2.bf16.msra.mxu0 0
        %507 = vmatprep.subr.bf16.mxu0 0
        %508 = vmatpush2.bf16.msra.mxu0 0
        %509 = vmatprep.subr.bf16.mxu0 0
        %510 = vmatpush2.bf16.msra.mxu0 0
        %511 = vmatprep.subr.bf16.mxu0 0
        %512 = vmatpush2.bf16.msra.mxu0 0
        %513 = vmatprep.mubr.bf16.mxu0 0
        %514 = vmatmul.mubr.bf16.gmra.mxu0 %v417
        %v515 = vpop.f32.mrf.mxu0
        %v516 = vadd.f32 0.0, %v515
        %v517 = vpop.f32.mrf.mxu0
        %v518 = vpop.f32.mrf.mxu0
        %v519 = vadd.f32 0.0, %v518
        %v520 = vpop.f32.mrf.mxu0
        %521 = vmatprep.mubr.bf16.mxu0 0
        %522 = vmatmul.mubr.bf16.gmra.mxu0 %v418
        %v523 = vpop.f32.mrf.mxu0
        %v524 = vadd.f32 0.0, %v523
        %v525 = vpop.f32.mrf.mxu0
        %v526 = vpop.f32.mrf.mxu0
        %v527 = vadd.f32 0.0, %v526
        %v528 = vpop.f32.mrf.mxu0
        %529 = vmatprep.mubr.bf16.mxu0 0
        %530 = vmatmul.mubr.bf16.gmra.mxu0 %v419
        %v531 = vpop.f32.mrf.mxu0
        %v532 = vadd.f32 0.0, %v531
        %v533 = vpop.f32.mrf.mxu0
        %v534 = vpop.f32.mrf.mxu0
        %v535 = vadd.f32 0.0, %v534
        %v536 = vpop.f32.mrf.mxu0
        %537 = vmatprep.mubr.bf16.mxu0 0
        %538 = vmatmul.mubr.bf16.gmra.mxu0 %v420
        %v539 = vpop.f32.mrf.mxu0
        %v540 = vadd.f32 0.0, %v539
        %v541 = vpop.f32.mrf.mxu0
        %v542 = vpop.f32.mrf.mxu0
        %v543 = vadd.f32 0.0, %v542
        %v544 = vpop.f32.mrf.mxu0
        %545 = vmatprep.mubr.bf16.mxu0 0
        %546 = vmatmul.mubr.bf16.gmra.mxu0 %v421
        %v547 = vpop.f32.mrf.mxu0
        %v548 = vadd.f32 0.0, %v547
        %v549 = vpop.f32.mrf.mxu0
        %v550 = vpop.f32.mrf.mxu0
        %v551 = vadd.f32 0.0, %v550
        %v552 = vpop.f32.mrf.mxu0
        %553 = vmatprep.mubr.bf16.mxu0 0
        %554 = vmatmul.mubr.bf16.gmra.mxu0 %v422
        %v555 = vpop.f32.mrf.mxu0
        %v556 = vadd.f32 0.0, %v555
        %v557 = vpop.f32.mrf.mxu0
        %v558 = vpop.f32.mrf.mxu0
        %v559 = vadd.f32 0.0, %v558
        %v560 = vpop.f32.mrf.mxu0
        %561 = vmatprep.mubr.bf16.mxu0 0
        %562 = vmatmul.mubr.bf16.gmra.mxu0 %v423
        %v563 = vpop.f32.mrf.mxu0
        %v564 = vadd.f32 0.0, %v563
        %v565 = vpop.f32.mrf.mxu0
        %v566 = vpop.f32.mrf.mxu0
        %v567 = vadd.f32 0.0, %v566
        %v568 = vpop.f32.mrf.mxu0
        %569 = vmatprep.mubr.bf16.mxu0 0
        %570 = vmatmul.mubr.bf16.gmra.mxu0 %v424
        %v571 = vpop.f32.mrf.mxu0
        %v572 = vadd.f32 0.0, %v571
        %v573 = vpop.f32.mrf.mxu0
        %v574 = vpop.f32.mrf.mxu0
        %v575 = vadd.f32 0.0, %v574
        %v576 = vpop.f32.mrf.mxu0
        %577 = vdwg.mxu0
        %v578 = vadd.f32 %v337, %v516
        %v579 = vadd.f32 %v338, %v519
        %v580 = vadd.f32 %v339, %v524
        %v581 = vadd.f32 %v340, %v527
        %v582 = vadd.f32 %v341, %v532
        %v583 = vadd.f32 %v342, %v535
        %v584 = vadd.f32 %v343, %v540
        %v585 = vadd.f32 %v344, %v543
        %v586 = vadd.f32 %v345, %v548
        %v587 = vadd.f32 %v346, %v551
        %v588 = vadd.f32 %v347, %v556
        %v589 = vadd.f32 %v348, %v559
        %v590 = vadd.f32 %v349, %v564
        %v591 = vadd.f32 %v350, %v567
        %v592 = vadd.f32 %v351, %v572
        %v593 = vadd.f32 %v352, %v575
        %vm594 = vcmask 523264
        %595 = vst.msk [vmem:[#allocation2] sm:$0xff] %vm594, %v578
        %596 = vst.msk [vmem:[#allocation2 + $0x8] sm:$0xff] %vm594, %v579
        %597 = vst.msk [vmem:[#allocation2 + $0x10] sm:$0xff] %vm594, %v580
        %598 = vst.msk [vmem:[#allocation2 + $0x18] sm:$0xff] %vm594, %v581
        %599 = vst.msk [vmem:[#allocation2 + $0x20] sm:$0xff] %vm594, %v582
        %600 = vst.msk [vmem:[#allocation2 + $0x28] sm:$0xff] %vm594, %v583
        %601 = vst.msk [vmem:[#allocation2 + $0x30] sm:$0xff] %vm594, %v584
        %602 = vst.msk [vmem:[#allocation2 + $0x38] sm:$0xff] %vm594, %v585
        %603 = vst.msk [vmem:[#allocation2 + $0x40] sm:$0xff] %vm594, %v586
        %604 = vst.msk [vmem:[#allocation2 + $0x48] sm:$0xff] %vm594, %v587
        %605 = vst.msk [vmem:[#allocation2 + $0x50] sm:$0xff] %vm594, %v588
        %606 = vst.msk [vmem:[#allocation2 + $0x58] sm:$0xff] %vm594, %v589
        %607 = vst.msk [vmem:[#allocation2 + $0x60] sm:$0xff] %vm594, %v590
        %608 = vst.msk [vmem:[#allocation2 + $0x68] sm:$0xff] %vm594, %v591
        %609 = vst.msk [vmem:[#allocation2 + $0x70] sm:$0xff] %vm594, %v592
        %610 = vst.msk [vmem:[#allocation2 + $0x78] sm:$0xff] %vm594, %v593
        %p611 = scmp.eq.s32.totalorder %s19, 1
        // Predicated region
        $region78: #{gnn_forward.4} parent=68 // pred_check
          %p612 = pneg %p611
        $region79: #{gnn_forward.4} parent=68 // pred_check_branch
          %614 = sbr.rel (%p612) target = $region81
        $region80: #{gnn_forward.4} parent=68 // pred_region
          %v615 = vld [vmem:[#allocation2] sm:$0xff]
          %v616 = vld [vmem:[#allocation2 + $0x8] sm:$0xff]
          %v617 = vld [vmem:[#allocation2 + $0x10] sm:$0xff]
          %v618 = vld [vmem:[#allocation2 + $0x18] sm:$0xff]
          %v619 = vld [vmem:[#allocation2 + $0x20] sm:$0xff]
          %v620 = vld [vmem:[#allocation2 + $0x28] sm:$0xff]
          %v621 = vld [vmem:[#allocation2 + $0x30] sm:$0xff]
          %v622 = vld [vmem:[#allocation2 + $0x38] sm:$0xff]
          %v623 = vld [vmem:[#allocation2 + $0x40] sm:$0xff]
          %v624 = vld [vmem:[#allocation2 + $0x48] sm:$0xff]
          %v625 = vld [vmem:[#allocation2 + $0x50] sm:$0xff]
          %v626 = vld [vmem:[#allocation2 + $0x58] sm:$0xff]
          %v627 = vld [vmem:[#allocation2 + $0x60] sm:$0xff]
          %v628 = vld [vmem:[#allocation2 + $0x68] sm:$0xff]
          %v629 = vld [vmem:[#allocation2 + $0x70] sm:$0xff]
          %v630 = vld [vmem:[#allocation2 + $0x78] sm:$0xff]
          %v631 = vld [vmem:[%s2] sm:$0x1]
          %v633 = vlaneseq
          %v634 = vshrl.u32 %v633, 7
          %v635 = vsub.s32 0, %v634
          %v636 = vrot.slane %v631, %v635
          %v638 = vadd.f32 %v615, %v636
          %v639 = vadd.f32 %v616, %v636
          %v640 = vadd.f32 %v617, %v636
          %v641 = vadd.f32 %v618, %v636
          %v642 = vadd.f32 %v619, %v636
          %v643 = vadd.f32 %v620, %v636
          %v644 = vadd.f32 %v621, %v636
          %v645 = vadd.f32 %v622, %v636
          %v646 = vadd.f32 %v623, %v636
          %v647 = vadd.f32 %v624, %v636
          %v648 = vadd.f32 %v625, %v636
          %v649 = vadd.f32 %v626, %v636
          %v650 = vadd.f32 %v627, %v636
          %v651 = vadd.f32 %v628, %v636
          %v652 = vadd.f32 %v629, %v636
          %v653 = vadd.f32 %v630, %v636
          %v654 = vmax.f32 %v638, 0.0
          %v655 = vmax.f32 %v639, 0.0
          %v656 = vmax.f32 %v640, 0.0
          %v657 = vmax.f32 %v641, 0.0
          %v658 = vmax.f32 %v642, 0.0
          %v659 = vmax.f32 %v643, 0.0
          %v660 = vmax.f32 %v644, 0.0
          %v661 = vmax.f32 %v645, 0.0
          %v662 = vmax.f32 %v646, 0.0
          %v663 = vmax.f32 %v647, 0.0
          %v664 = vmax.f32 %v648, 0.0
          %v665 = vmax.f32 %v649, 0.0
          %v666 = vmax.f32 %v650, 0.0
          %v667 = vmax.f32 %v651, 0.0
          %v668 = vmax.f32 %v652, 0.0
          %v669 = vmax.f32 %v653, 0.0
          %670 = vst.msk [vmem:[%s313] sm:$0xff] %vm594, %v654
          %671 = vst.msk [vmem:[%s313 + $0x8] sm:$0xff] %vm594, %v655
          %672 = vst.msk [vmem:[%s313 + $0x10] sm:$0xff] %vm594, %v656
          %673 = vst.msk [vmem:[%s313 + $0x18] sm:$0xff] %vm594, %v657
          %674 = vst.msk [vmem:[%s313 + $0x20] sm:$0xff] %vm594, %v658
          %675 = vst.msk [vmem:[%s313 + $0x28] sm:$0xff] %vm594, %v659
          %676 = vst.msk [vmem:[%s313 + $0x30] sm:$0xff] %vm594, %v660
          %677 = vst.msk [vmem:[%s313 + $0x38] sm:$0xff] %vm594, %v661
          %678 = vst.msk [vmem:[%s313 + $0x40] sm:$0xff] %vm594, %v662
          %679 = vst.msk [vmem:[%s313 + $0x48] sm:$0xff] %vm594, %v663
          %680 = vst.msk [vmem:[%s313 + $0x50] sm:$0xff] %vm594, %v664
          %681 = vst.msk [vmem:[%s313 + $0x58] sm:$0xff] %vm594, %v665
          %682 = vst.msk [vmem:[%s313 + $0x60] sm:$0xff] %vm594, %v666
          %683 = vst.msk [vmem:[%s313 + $0x68] sm:$0xff] %vm594, %v667
          %684 = vst.msk [vmem:[%s313 + $0x70] sm:$0xff] %vm594, %v668
          %685 = vst.msk [vmem:[%s313 + $0x78] sm:$0xff] %vm594, %v669
        $region81: #{gnn_forward.4} parent=68 // pred_fallthru
          _
        %s686 = smul.u32 16, %s18
        %p687 = scmp.lt.s32.totalorder %s686, 31
        %s688 = scalar_select %p687, %s686, 31
        %s689 = smul.addr %s688, 8
        %s690 = scalar_lea.vmem %s3, %s689
        // Predicated region
        $region82: #{gnn_forward.4} parent=68 // pred_check
          %p691 = pneg %p119
        $region83: #{gnn_forward.4} parent=68 // pred_check_branch
          %693 = sbr.rel (%p691) target = $region85
        $region84: #{gnn_forward.4} parent=68 // pred_region
          %s694 = smul.u32 16, %s18
        $region85: #{gnn_forward.4} parent=68 // pred_fallthru
          _
      $region69: #{gnn_forward.4} parent=5 // pred_fallthru
        _
      %p695 = scmp.le.s32.totalorder 2, %s9
      // Predicated region
      $region86: #{gnn_forward.4} parent=5 // pred_check
        %p696 = pneg %p695
      $region87: #{gnn_forward.4} parent=5 // pred_check_branch
        %698 = sbr.rel (%p696) target = $region89
      $region88: #{gnn_forward.4} parent=5 // pred_region
        %s699 = ssub.s32 %s9, 2
        // Predicated region
        $region90: #{gnn_forward.4} parent=88 // pred_check
          %p700 = pneg %p125
        $region91: #{gnn_forward.4} parent=88 // pred_check_branch
          %702 = sbr.rel (%p700) target = $region93
        $region92: #{gnn_forward.4} parent=88 // pred_region
          %s703 = smul.u32 16, %s20
          %p704 = scmp.lt.s32.totalorder %s703, 31
          %s705 = scalar_select %p704, %s703, 31
          %s706 = smul.addr %s705, 8
          %s707 = scalar_lea.vmem %s3, %s706
        $region93: #{gnn_forward.4} parent=88 // pred_fallthru
          _
      $region89: #{gnn_forward.4} parent=5 // pred_fallthru
        _
    $region6: #{gnn_forward.4} parent=1 // loop_footer
      %s13 = sadd.s32 1, %s9
    $region7: #{gnn_forward.4} parent=1 // loop_footer_branch
      %8 = sbr.rel target = $region3
    $region8: #{gnn_forward.4} parent=1 // loop_exit
      _

// kernel: gnn_forward.3
$region0: #{gnn_forward.3}
  #allocation0 [shape = 'u32[]', space=smem, size = 0x4, offset = 0x4, fixed_abs, tag = 'smem constant byte address 0x4 - core index']
  #allocation1 [shape = 'u32[144,128]{1,0:T(1,128)}', space=vmem, size = 0x12000, scoped, tag = 'internal scratch']
  #allocation2 [shape = 'f32[128,32]{1,0:T(8,128)}', space=vmem, size = 0x10000, scoped, tag = 'scratch operand']
  %s0 = inlined_call_operand.vmem [shape: bf16[256,256], index: 0, kind: input, shape index: {}]
  %s1 = inlined_call_operand.vmem [shape: bf16[256,32], index: 1, kind: input, shape index: {}]
  %s2 = inlined_call_operand.vmem [shape: f32[1,32], index: 2, kind: input, shape index: {}]
  %s3 = inlined_call_operand.vmem [shape: f32[256,32], index: 3, kind: output, shape index: {}]
  %s4 = sld [smem:[#allocation0]]
  $region94: #{gnn_forward.3} parent=0
    _
  %s6 = ssub.s32 1, %s4
  %s7 = scalar_select 0, %s6, %s4
  $region1: #{gnn_forward.3} parent=0
    #allocation3 [shape = 'u8[65536]{0}', space=vmem, size = 0x10000, scoped, tag = 'input window, operand 0']
    loop: start=0, step=1, limit=6
    $region2: #{gnn_forward.3} parent=1 // loop_pre_header
      _
    $region3: #{gnn_forward.3} parent=1 // loop_header
      %s9 = sphi 0, %s13
      %p10 = scmp.ge.s32.totalorder %s9, 6
      %s16 = sphi 0, %s28
      %s17 = sphi 0, %s24
      %s18 = sphi 0, %s16
      %s19 = sphi 0, %s17
      %s20 = sphi 0, %s18
      %s21 = sphi 0, %s19
      %s33 = sphi 0, %s35
      %s36 = sphi 0, %s33
      %s37 = sphi 0, %s36
      %s53 = sphi 0, %s37
      %s59 = sphi 0, %s61
      %s62 = sphi 0, %s59
      %s63 = sphi 0, %s62
      %s79 = sphi 0, %s63
      %s83 = sphi 0, %s83
      %s85 = sphi 0, %s83
      %s86 = sphi 0, %s85
      %s100 = sphi 0, %s86
      %s106 = sphi 0, %s108
      %s109 = sphi 0, %s106
      %s110 = sphi 0, %s109
      %s126 = sphi 0, %s110
    $region4: #{gnn_forward.3} parent=1 // loop_header_branch
      %12 = sbr.rel (%p10) target = $region8
    $region5: #{gnn_forward.3} parent=1 // loop_body
      %s14 = ssub.s32 %s9, 1
      %s15 = ssub.s32 %s9, 2
      %s22 = sadd.s32 1, %s17
      %p23 = scmp.ge.s32.totalorder %s22, 2
      %s24 = scalar_select %p23, 0, %s22
      %s25 = sadd.s32 1, %s16
      %s26 = scalar_select %p23, %s25, %s16
      %p27 = scmp.ge.s32.totalorder %s26, 2
      %s28 = scalar_select %p27, 0, %s26
      %s29 = ssub.s32 %s16, %s28
      %s30 = ssub.s32 %s17, %s24
      %s31 = sor.u32 %s29, %s30
      %p32 = scmp.eq.s32.totalorder %s31, 0
      %s34 = sadd.s32 %s33, 1
      %s35 = scalar_select %p32, %s33, %s34
      %p38 = pneg %p32
      %p39 = scmp.eq.s32.totalorder %s9, 3
      %p40 = por %p38, %p39
      %p41 = scmp.ne.s32.totalorder %s33, %s36
      %p42 = scmp.eq.s32.totalorder %s9, 0
      %p43 = por %p41, %p42
      %p44 = scmp.ne.s32.totalorder %s33, %s36
      %p45 = scmp.eq.s32.totalorder %s14, 3
      %p46 = por %p44, %p45
      %p47 = scmp.ne.s32.totalorder %s36, %s37
      %p48 = scmp.eq.s32.totalorder %s14, 0
      %p49 = por %p47, %p48
      %p50 = scmp.ne.s32.totalorder %s36, %s37
      %p51 = scmp.eq.s32.totalorder %s15, 3
      %p52 = por %p50, %p51
      %p54 = scmp.ne.s32.totalorder %s37, %s53
      %p55 = scmp.eq.s32.totalorder %s15, 0
      %p56 = por %p54, %p55
      %s57 = ssub.s32 %s17, %s24
      %p58 = scmp.eq.s32.totalorder %s57, 0
      %s60 = sadd.s32 %s59, 1
      %s61 = scalar_select %p58, %s59, %s60
      %p64 = pneg %p58
      %p65 = scmp.eq.s32.totalorder %s9, 3
      %p66 = por %p64, %p65
      %p67 = scmp.ne.s32.totalorder %s59, %s62
      %p68 = scmp.eq.s32.totalorder %s9, 0
      %p69 = por %p67, %p68
      %p70 = scmp.ne.s32.totalorder %s59, %s62
      %p71 = scmp.eq.s32.totalorder %s14, 3
      %p72 = por %p70, %p71
      %p73 = scmp.ne.s32.totalorder %s62, %s63
      %p74 = scmp.eq.s32.totalorder %s14, 0
      %p75 = por %p73, %p74
      %p76 = scmp.ne.s32.totalorder %s62, %s63
      %p77 = scmp.eq.s32.totalorder %s15, 3
      %p78 = por %p76, %p77
      %p80 = scmp.ne.s32.totalorder %s63, %s79
      %p81 = scmp.eq.s32.totalorder %s15, 0
      %p82 = por %p80, %p81
      %s84 = sadd.s32 %s83, 1
      %p87 = scmp.eq.s32.totalorder %s9, 3
      %p88 = scmp.ne.s32.totalorder %s83, %s85
      %p89 = scmp.eq.s32.totalorder %s9, 0
      %p90 = por %p88, %p89
      %p91 = scmp.ne.s32.totalorder %s83, %s85
      %p92 = scmp.eq.s32.totalorder %s14, 3
      %p93 = por %p91, %p92
      %p94 = scmp.ne.s32.totalorder %s85, %s86
      %p95 = scmp.eq.s32.totalorder %s14, 0
      %p96 = por %p94, %p95
      %p97 = scmp.ne.s32.totalorder %s85, %s86
      %p98 = scmp.eq.s32.totalorder %s15, 3
      %p99 = por %p97, %p98
      %p101 = scmp.ne.s32.totalorder %s86, %s100
      %p102 = scmp.eq.s32.totalorder %s15, 0
      %p103 = por %p101, %p102
      %s104 = ssub.s32 %s16, %s28
      %p105 = scmp.eq.s32.totalorder %s104, 0
      %s107 = sadd.s32 %s106, 1
      %s108 = scalar_select %p105, %s106, %s107
      %p111 = pneg %p105
      %p112 = scmp.eq.s32.totalorder %s9, 3
      %p113 = por %p111, %p112
      %p114 = scmp.ne.s32.totalorder %s106, %s109
      %p115 = scmp.eq.s32.totalorder %s9, 0
      %p116 = por %p114, %p115
      %p117 = scmp.ne.s32.totalorder %s106, %s109
      %p118 = scmp.eq.s32.totalorder %s14, 3
      %p119 = por %p117, %p118
      %p120 = scmp.ne.s32.totalorder %s109, %s110
      %p121 = scmp.eq.s32.totalorder %s14, 0
      %p122 = por %p120, %p121
      %p123 = scmp.ne.s32.totalorder %s109, %s110
      %p124 = scmp.eq.s32.totalorder %s15, 3
      %p125 = por %p123, %p124
      %p127 = scmp.ne.s32.totalorder %s110, %s126
      %p128 = scmp.eq.s32.totalorder %s15, 0
      %p129 = por %p127, %p128
      %p130 = scmp.le.s32.totalorder 1, %s9
      %p131 = scmp.lt.s32.totalorder %s9, 5
      %p132 = pnand %p130, %p131
      %p133 = pneg %p132
      // Predicated region
      $region9: #{gnn_forward.3} parent=5 // pred_check
        _
      $region10: #{gnn_forward.3} parent=5 // pred_check_branch
        %135 = sbr.rel (%p132) target = $region12
      $region11: #{gnn_forward.3} parent=5 // pred_region
        %s136 = ssub.s32 %s9, 1
        // Predicated region
        $region13: #{gnn_forward.3} parent=11 // pred_check
          %p137 = pneg %p96
        $region14: #{gnn_forward.3} parent=11 // pred_check_branch
          %139 = sbr.rel (%p137) target = $region16
        $region15: #{gnn_forward.3} parent=11 // pred_region
          _
        $region16: #{gnn_forward.3} parent=11 // pred_fallthru
          _
      $region12: #{gnn_forward.3} parent=5 // pred_fallthru
        _
      %p140 = scmp.lt.s32.totalorder %s9, 4
      // Predicated region
      $region17: #{gnn_forward.3} parent=5 // pred_check
        %p141 = pneg %p140
      $region18: #{gnn_forward.3} parent=5 // pred_check_branch
        %143 = sbr.rel (%p141) target = $region20
      $region19: #{gnn_forward.3} parent=5 // pred_region
        // Predicated region
        $region21: #{gnn_forward.3} parent=19 // pred_check
          %p144 = pneg %p43
        $region22: #{gnn_forward.3} parent=19 // pred_check_branch
          %146 = sbr.rel (%p144) target = $region24
        $region23: #{gnn_forward.3} parent=19 // pred_region
          %s147 = sand.u32 %s33, 1
          %s148 = sand.u32 %s33, 1
          %s149 = smul.addr %s148, 64
          %s150 = scalar_lea.vmem [#allocation3], %s149
          %s151 = smul.u32 16, %s16
          %s152 = smul.addr %s151, 2
          %s153 = sadd.s32 %s17, %s152
          %s154 = smul.addr %s153, 4
          %s155 = scalar_lea.vmem %s0, %s154
          // Predicated region
          $region25: #{gnn_forward.3} parent=23 // pred_check
            _
          $region26: #{gnn_forward.3} parent=23 // pred_check_branch
            %157 = sbr.rel (0) target = $region28
          $region27: #{gnn_forward.3} parent=23 // pred_region
            // Predicated region
            $region29: #{gnn_forward.3} parent=27 // pred_check
              _
            $region30: #{gnn_forward.3} parent=27 // pred_check_branch
              %159 = sbr.rel target = $region32
            $region31: #{gnn_forward.3} parent=27 // pred_region
              // Predicated region
              $region44: #{gnn_forward.3} parent=31 // pred_check
                _
              $region45: #{gnn_forward.3} parent=31 // pred_check_branch
                %205 = sbr.rel (0) target = $region47
              $region46: #{gnn_forward.3} parent=31 // pred_region
                loop: start=0, step=1, limit=1
                $region48: #{gnn_forward.3} parent=46 // loop_pre_header
                  _
                $region49: #{gnn_forward.3} parent=46 // loop_header
                  %s207 = sphi 0, %s211
                  %p208 = scmp.ge.s32.totalorder %s207, 1
                  %s212 = sphi %s155, %s155
                  %s213 = sphi %s150, %s150
                $region50: #{gnn_forward.3} parent=46 // loop_header_branch
                  %210 = sbr.rel (%p208) target = $region54
                $region51: #{gnn_forward.3} parent=46 // loop_body
                  _
                $region52: #{gnn_forward.3} parent=46 // loop_footer
                  %s211 = sadd.s32 1, %s207
                $region53: #{gnn_forward.3} parent=46 // loop_footer_branch
                  %206 = sbr.rel target = $region49
                $region54: #{gnn_forward.3} parent=46 // loop_exit
                  _
                %s215 = ssub.s32 16, 1
                loop: start=0, step=1, limit=1
                $region55: #{gnn_forward.3} parent=46 // loop_pre_header
                  _
                $region56: #{gnn_forward.3} parent=46 // loop_header
                  %s217 = sphi 0, %s221
                  %p218 = scmp.ge.s32.totalorder %s217, 1
                  %s222 = sphi %s155, %s155
                  %s223 = sphi %s150, %s150
                $region57: #{gnn_forward.3} parent=46 // loop_header_branch
                  %220 = sbr.rel (%p218) target = $region61
                $region58: #{gnn_forward.3} parent=46 // loop_body
                  %v224 = vld [vmem:[%s222] sm:%s215]
                  %225 = vst [vmem:[%s223] sm:%s215] %v224
                  %v226 = vld [vmem:[%s222 + $0x8] sm:%s215]
                  %227 = vst [vmem:[%s223 + $0x4] sm:%s215] %v226
                  %v228 = vld [vmem:[%s222 + $0x10] sm:%s215]
                  %229 = vst [vmem:[%s223 + $0x8] sm:%s215] %v228
                  %v230 = vld [vmem:[%s222 + $0x18] sm:%s215]
                  %231 = vst [vmem:[%s223 + $0xc] sm:%s215] %v230
                  %v232 = vld [vmem:[%s222 + $0x20] sm:%s215]
                  %233 = vst [vmem:[%s223 + $0x10] sm:%s215] %v232
                  %v234 = vld [vmem:[%s222 + $0x28] sm:%s215]
                  %235 = vst [vmem:[%s223 + $0x14] sm:%s215] %v234
                  %v236 = vld [vmem:[%s222 + $0x30] sm:%s215]
                  %237 = vst [vmem:[%s223 + $0x18] sm:%s215] %v236
                  %v238 = vld [vmem:[%s222 + $0x38] sm:%s215]
                  %239 = vst [vmem:[%s223 + $0x1c] sm:%s215] %v238
                  %v240 = vld [vmem:[%s222 + $0x40] sm:%s215]
                  %241 = vst [vmem:[%s223 + $0x20] sm:%s215] %v240
                  %v242 = vld [vmem:[%s222 + $0x48] sm:%s215]
                  %243 = vst [vmem:[%s223 + $0x24] sm:%s215] %v242
                  %v244 = vld [vmem:[%s222 + $0x50] sm:%s215]
                  %245 = vst [vmem:[%s223 + $0x28] sm:%s215] %v244
                  %v246 = vld [vmem:[%s222 + $0x58] sm:%s215]
                  %247 = vst [vmem:[%s223 + $0x2c] sm:%s215] %v246
                  %v248 = vld [vmem:[%s222 + $0x60] sm:%s215]
                  %249 = vst [vmem:[%s223 + $0x30] sm:%s215] %v248
                  %v250 = vld [vmem:[%s222 + $0x68] sm:%s215]
                  %251 = vst [vmem:[%s223 + $0x34] sm:%s215] %v250
                  %v252 = vld [vmem:[%s222 + $0x70] sm:%s215]
                  %253 = vst [vmem:[%s223 + $0x38] sm:%s215] %v252
                  %v254 = vld [vmem:[%s222 + $0x78] sm:%s215]
                  %255 = vst [vmem:[%s223 + $0x3c] sm:%s215] %v254
                $region59: #{gnn_forward.3} parent=46 // loop_footer
                  %s221 = sadd.s32 1, %s217
                $region60: #{gnn_forward.3} parent=46 // loop_footer_branch
                  %216 = sbr.rel target = $region56
                $region61: #{gnn_forward.3} parent=46 // loop_exit
                  _
              $region47: #{gnn_forward.3} parent=31 // pred_fallthru
                _
            $region32: #{gnn_forward.3} parent=27 // pred_fallthru
              _
            // Predicated region
            $region33: #{gnn_forward.3} parent=27 // pred_check
              _
            $region34: #{gnn_forward.3} parent=27 // pred_check_branch
              %161 = sbr.rel (0) target = $region36
            $region35: #{gnn_forward.3} parent=27 // pred_region
              %s163 = ssub.s32 16, 1
              loop: start=0, step=1, limit=1
              $region37: #{gnn_forward.3} parent=35 // loop_pre_header
                _
              $region38: #{gnn_forward.3} parent=35 // loop_header
                %s165 = sphi 0, %s169
                %p166 = scmp.ge.s32.totalorder %s165, 1
                %s170 = sphi %s155, %s155
                %s171 = sphi %s150, %s150
              $region39: #{gnn_forward.3} parent=35 // loop_header_branch
                %168 = sbr.rel (%p166) target = $region43
              $region40: #{gnn_forward.3} parent=35 // loop_body
                %v172 = vld [vmem:[%s170] sm:%s163]
                %173 = vst [vmem:[%s171] sm:%s163] %v172
                %v174 = vld [vmem:[%s170 + $0x8] sm:%s163]
                %175 = vst [vmem:[%s171 + $0x4] sm:%s163] %v174
                %v176 = vld [vmem:[%s170 + $0x10] sm:%s163]
                %177 = vst [vmem:[%s171 + $0x8] sm:%s163] %v176
                %v178 = vld [vmem:[%s170 + $0x18] sm:%s163]
                %179 = vst [vmem:[%s171 + $0xc] sm:%s163] %v178
                %v180 = vld [vmem:[%s170 + $0x20] sm:%s163]
                %181 = vst [vmem:[%s171 + $0x10] sm:%s163] %v180
                %v182 = vld [vmem:[%s170 + $0x28] sm:%s163]
                %183 = vst [vmem:[%s171 + $0x14] sm:%s163] %v182
                %v184 = vld [vmem:[%s170 + $0x30] sm:%s163]
                %185 = vst [vmem:[%s171 + $0x18] sm:%s163] %v184
                %v186 = vld [vmem:[%s170 + $0x38] sm:%s163]
                %187 = vst [vmem:[%s171 + $0x1c] sm:%s163] %v186
                %v188 = vld [vmem:[%s170 + $0x40] sm:%s163]
                %189 = vst [vmem:[%s171 + $0x20] sm:%s163] %v188
                %v190 = vld [vmem:[%s170 + $0x48] sm:%s163]
                %191 = vst [vmem:[%s171 + $0x24] sm:%s163] %v190
                %v192 = vld [vmem:[%s170 + $0x50] sm:%s163]
                %193 = vst [vmem:[%s171 + $0x28] sm:%s163] %v192
                %v194 = vld [vmem:[%s170 + $0x58] sm:%s163]
                %195 = vst [vmem:[%s171 + $0x2c] sm:%s163] %v194
                %v196 = vld [vmem:[%s170 + $0x60] sm:%s163]
                %197 = vst [vmem:[%s171 + $0x30] sm:%s163] %v196
                %v198 = vld [vmem:[%s170 + $0x68] sm:%s163]
                %199 = vst [vmem:[%s171 + $0x34] sm:%s163] %v198
                %v200 = vld [vmem:[%s170 + $0x70] sm:%s163]
                %201 = vst [vmem:[%s171 + $0x38] sm:%s163] %v200
                %v202 = vld [vmem:[%s170 + $0x78] sm:%s163]
                %203 = vst [vmem:[%s171 + $0x3c] sm:%s163] %v202
              $region41: #{gnn_forward.3} parent=35 // loop_footer
                %s169 = sadd.s32 1, %s165
              $region42: #{gnn_forward.3} parent=35 // loop_footer_branch
                %164 = sbr.rel target = $region38
              $region43: #{gnn_forward.3} parent=35 // loop_exit
                _
            $region36: #{gnn_forward.3} parent=27 // pred_fallthru
              _
          $region28: #{gnn_forward.3} parent=23 // pred_fallthru
            _
          %256 = vnop
        $region24: #{gnn_forward.3} parent=19 // pred_fallthru
          _
        // Predicated region
        $region62: #{gnn_forward.3} parent=19 // pred_check
          %p257 = pneg %p69
        $region63: #{gnn_forward.3} parent=19 // pred_check_branch
          %259 = sbr.rel (%p257) target = $region65
        $region64: #{gnn_forward.3} parent=19 // pred_region
          %s260 = smul.u32 16, %s17
          %p261 = scmp.lt.s32.totalorder %s260, 31
          %s262 = scalar_select %p261, %s260, 31
          %s263 = smul.addr %s262, 4
          %s264 = scalar_lea.vmem %s1, %s263
          %s265 = smul.u32 16, %s17
        $region65: #{gnn_forward.3} parent=19 // pred_fallthru
          _
      $region20: #{gnn_forward.3} parent=5 // pred_fallthru
        _
      %p266 = scmp.le.s32.totalorder 1, %s9
      %p267 = scmp.lt.s32.totalorder %s9, 5
      %p268 = pnand %p266, %p267
      %p269 = pneg %p268
      // Predicated region
      $region66: #{gnn_forward.3} parent=5 // pred_check
        _
      $region67: #{gnn_forward.3} parent=5 // pred_check_branch
        %271 = sbr.rel (%p268) target = $region69
      $region68: #{gnn_forward.3} parent=5 // pred_region
        %s272 = ssub.s32 %s9, 1
        %s273 = sand.u32 %s36, 1
        %s274 = sand.u32 %s36, 1
        %s275 = smul.addr %s274, 64
        %s276 = scalar_lea.vmem [#allocation3], %s275
        // Predicated region
        $region70: #{gnn_forward.3} parent=68 // pred_check
          %p277 = pneg %p49
        $region71: #{gnn_forward.3} parent=68 // pred_check_branch
          %279 = sbr.rel (%p277) target = $region73
        $region72: #{gnn_forward.3} parent=68 // pred_region
          _
        $region73: #{gnn_forward.3} parent=68 // pred_fallthru
          _
        %s280 = sand.u32 %s36, 1
        %s281 = sand.u32 %s36, 1
        %s282 = smul.addr %s281, 64
        %s283 = scalar_lea.vmem [#allocation3], %s282
        %p284 = pneg %p49
        %p285 = pneg %p46
        %s286 = smul.u32 16, %s19
        %p287 = scmp.lt.s32.totalorder %s286, 31
        %s288 = scalar_select %p287, %s286, 31
        %s289 = smul.addr %s288, 4
        %s290 = scalar_lea.vmem %s1, %s289
        %p291 = pneg %p75
        %p292 = pneg %p72
        %p293 = pneg %p96
        %p294 = pneg %p93
        %p295 = pneg %p122
        %p296 = pneg %p119
        %s297 = smul.u32 16, %s18
        %p298 = scmp.lt.s32.totalorder %s297, 31
        %s299 = scalar_select %p298, %s297, 31
        %s300 = smul.addr %s299, 8
        %s301 = scalar_lea.vmem %s3, %s300
        %s302 = smul.u32 16, %s18
        %s303 = smul.u32 16, %s19
        %p304 = scmp.lt.s32.totalorder %s303, 31
        %s305 = scalar_select %p304, %s303, 31
        %s306 = smul.addr %s305, 4
        %s307 = scalar_lea.vmem %s1, %s306
        %s308 = smul.u32 16, %s19
        %s309 = smul.u32 16, %s18
        %p310 = scmp.lt.s32.totalorder %s309, 31
        %s311 = scalar_select %p310, %s309, 31
        %s312 = smul.addr %s311, 8
        %s313 = scalar_lea.vmem %s3, %s312
        %s314 = smul.u32 16, %s18
        %p316 = scmp.eq.s32.totalorder %s19, 0
        // Predicated region
        $region74: #{gnn_forward.3} parent=68 // pred_check
          %p317 = pneg %p316
        $region75: #{gnn_forward.3} parent=68 // pred_check_branch
          %319 = sbr.rel (%p317) target = $region77
        $region76: #{gnn_forward.3} parent=68 // pred_region
          %vm320 = vcmask 261120
          %321 = vst.msk [vmem:[#allocation2] sm:$0xff] %vm320, 0.0
          %322 = vst.msk [vmem:[#allocation2 + $0x8] sm:$0xff] %vm320, 0.0
          %323 = vst.msk [vmem:[#allocation2 + $0x10] sm:$0xff] %vm320, 0.0
          %324 = vst.msk [vmem:[#allocation2 + $0x18] sm:$0xff] %vm320, 0.0
          %325 = vst.msk [vmem:[#allocation2 + $0x20] sm:$0xff] %vm320, 0.0
          %326 = vst.msk [vmem:[#allocation2 + $0x28] sm:$0xff] %vm320, 0.0
          %327 = vst.msk [vmem:[#allocation2 + $0x30] sm:$0xff] %vm320, 0.0
          %328 = vst.msk [vmem:[#allocation2 + $0x38] sm:$0xff] %vm320, 0.0
          %329 = vst.msk [vmem:[#allocation2 + $0x40] sm:$0xff] %vm320, 0.0
          %330 = vst.msk [vmem:[#allocation2 + $0x48] sm:$0xff] %vm320, 0.0
          %331 = vst.msk [vmem:[#allocation2 + $0x50] sm:$0xff] %vm320, 0.0
          %332 = vst.msk [vmem:[#allocation2 + $0x58] sm:$0xff] %vm320, 0.0
          %333 = vst.msk [vmem:[#allocation2 + $0x60] sm:$0xff] %vm320, 0.0
          %334 = vst.msk [vmem:[#allocation2 + $0x68] sm:$0xff] %vm320, 0.0
          %335 = vst.msk [vmem:[#allocation2 + $0x70] sm:$0xff] %vm320, 0.0
          %336 = vst.msk [vmem:[#allocation2 + $0x78] sm:$0xff] %vm320, 0.0
        $region77: #{gnn_forward.3} parent=68 // pred_fallthru
          _
        %v337 = vld [vmem:[#allocation2] sm:$0xff]
        %v338 = vld [vmem:[#allocation2 + $0x8] sm:$0xff]
        %v339 = vld [vmem:[#allocation2 + $0x10] sm:$0xff]
        %v340 = vld [vmem:[#allocation2 + $0x18] sm:$0xff]
        %v341 = vld [vmem:[#allocation2 + $0x20] sm:$0xff]
        %v342 = vld [vmem:[#allocation2 + $0x28] sm:$0xff]
        %v343 = vld [vmem:[#allocation2 + $0x30] sm:$0xff]
        %v344 = vld [vmem:[#allocation2 + $0x38] sm:$0xff]
        %v345 = vld [vmem:[#allocation2 + $0x40] sm:$0xff]
        %v346 = vld [vmem:[#allocation2 + $0x48] sm:$0xff]
        %v347 = vld [vmem:[#allocation2 + $0x50] sm:$0xff]
        %v348 = vld [vmem:[#allocation2 + $0x58] sm:$0xff]
        %v349 = vld [vmem:[#allocation2 + $0x60] sm:$0xff]
        %v350 = vld [vmem:[#allocation2 + $0x68] sm:$0xff]
        %v351 = vld [vmem:[#allocation2 + $0x70] sm:$0xff]
        %v352 = vld [vmem:[#allocation2 + $0x78] sm:$0xff]
        %v353 = vld [vmem:[%s276] sm:$0xf]
        %v354 = vld [vmem:[%s276 + $0x4] sm:$0xf]
        %v355 = vld [vmem:[%s276 + $0x8] sm:$0xf]
        %v356 = vld [vmem:[%s276 + $0xc] sm:$0xf]
        %v357 = vld [vmem:[%s276 + $0x10] sm:$0xf]
        %v358 = vld [vmem:[%s276 + $0x14] sm:$0xf]
        %v359 = vld [vmem:[%s276 + $0x18] sm:$0xf]
        %v360 = vld [vmem:[%s276 + $0x1c] sm:$0xf]
        %v361 = vld [vmem:[%s276 + $0x20] sm:$0xf]
        %v362 = vld [vmem:[%s276 + $0x24] sm:$0xf]
        %v363 = vld [vmem:[%s276 + $0x28] sm:$0xf]
        %v364 = vld [vmem:[%s276 + $0x2c] sm:$0xf]
        %v365 = vld [vmem:[%s276 + $0x30] sm:$0xf]
        %v366 = vld [vmem:[%s276 + $0x34] sm:$0xf]
        %v367 = vld [vmem:[%s276 + $0x38] sm:$0xf]
        %v368 = vld [vmem:[%s276 + $0x3c] sm:$0xf]
        %v369 = vld [vmem:[%s307] sm:$0xf]
        %v370 = vld [vmem:[%s307 + $0x4] sm:$0xf]
        %v371 = vld [vmem:[%s307 + $0x8] sm:$0xf]
        %v372 = vld [vmem:[%s307 + $0xc] sm:$0xf]
        %v373 = vld [vmem:[%s307 + $0x10] sm:$0xf]
        %v374 = vld [vmem:[%s307 + $0x14] sm:$0xf]
        %v375 = vld [vmem:[%s307 + $0x18] sm:$0xf]
        %v376 = vld [vmem:[%s307 + $0x1c] sm:$0xf]
        %v377 = vld [vmem:[%s307 + $0x20] sm:$0xf]
        %v378 = vld [vmem:[%s307 + $0x24] sm:$0xf]
        %v379 = vld [vmem:[%s307 + $0x28] sm:$0xf]
        %v380 = vld [vmem:[%s307 + $0x2c] sm:$0xf]
        %v381 = vld [vmem:[%s307 + $0x30] sm:$0xf]
        %v382 = vld [vmem:[%s307 + $0x34] sm:$0xf]
        %v383 = vld [vmem:[%s307 + $0x38] sm:$0xf]
        %v384 = vld [vmem:[%s307 + $0x3c] sm:$0xf]
        %v401 = vunpack.c.l.b16 %v353
        %v402 = vunpack.c.l.b16 %v354
        %v403 = vunpack.c.l.b16 %v355
        %v404 = vunpack.c.l.b16 %v356
        %v405 = vunpack.c.l.b16 %v357
        %v406 = vunpack.c.l.b16 %v358
        %v407 = vunpack.c.l.b16 %v359
        %v408 = vunpack.c.l.b16 %v360
        %v409 = vunpack.c.l.b16 %v361
        %v410 = vunpack.c.l.b16 %v362
        %v411 = vunpack.c.l.b16 %v363
        %v412 = vunpack.c.l.b16 %v364
        %v413 = vunpack.c.l.b16 %v365
        %v414 = vunpack.c.l.b16 %v366
        %v415 = vunpack.c.l.b16 %v367
        %v416 = vunpack.c.l.b16 %v368
        %v417 = vpack.c.b16 %v402, %v401
        %v418 = vpack.c.b16 %v404, %v403
        %v419 = vpack.c.b16 %v406, %v405
        %v420 = vpack.c.b16 %v408, %v407
        %v421 = vpack.c.b16 %v410, %v409
        %v422 = vpack.c.b16 %v412, %v411
        %v423 = vpack.c.b16 %v414, %v413
        %v424 = vpack.c.b16 %v416, %v415
        %v449 = vunpack.c.l.b16 %v369
        %v450 = vunpack.c.l.b16 %v370
        %v451 = vunpack.c.l.b16 %v371
        %v452 = vunpack.c.l.b16 %v372
        %v453 = vunpack.c.l.b16 %v373
        %v454 = vunpack.c.l.b16 %v374
        %v455 = vunpack.c.l.b16 %v375
        %v456 = vunpack.c.l.b16 %v376
        %v457 = vunpack.c.l.b16 %v377
        %v458 = vunpack.c.l.b16 %v378
        %v459 = vunpack.c.l.b16 %v379
        %v460 = vunpack.c.l.b16 %v380
        %v461 = vunpack.c.l.b16 %v381
        %v462 = vunpack.c.l.b16 %v382
        %v463 = vunpack.c.l.b16 %v383
        %v464 = vunpack.c.l.b16 %v384
        %v465 = vpack.c.b16 %v450, %v449
        %v466 = vpack.c.b16 %v452, %v451
        %v467 = vpack.c.b16 %v454, %v453
        %v468 = vpack.c.b16 %v456, %v455
        %v469 = vpack.c.b16 %v458, %v457
        %v470 = vpack.c.b16 %v460, %v459
        %v471 = vpack.c.b16 %v462, %v461
        %v472 = vpack.c.b16 %v464, %v463
        %481 = vmatprep.subr.bf16.mxu0 0
        %482 = vmatpush1.bf16.msra.mxu0 %v472
        %483 = vmatprep.subr.bf16.mxu0 0
        %484 = vmatpush1.bf16.msra.mxu0 %v471
        %485 = vmatprep.subr.bf16.mxu0 0
        %486 = vmatpush1.bf16.msra.mxu0 %v470
        %487 = vmatprep.subr.bf16.mxu0 0
        %488 = vmatpush1.bf16.msra.mxu0 %v469
        %489 = vmatprep.subr.bf16.mxu0 0
        %490 = vmatpush1.bf16.msra.mxu0 %v468
        %491 = vmatprep.subr.bf16.mxu0 0
        %492 = vmatpush1.bf16.msra.mxu0 %v467
        %493 = vmatprep.subr.bf16.mxu0 0
        %494 = vmatpush1.bf16.msra.mxu0 %v466
        %495 = vmatprep.subr.bf16.mxu0 0
        %496 = vmatpush1.bf16.msra.mxu0 %v465
        %497 = vmatprep.subr.bf16.mxu0 0
        %498 = vmatpush2.bf16.msra.mxu0 0
        %499 = vmatprep.subr.bf16.mxu0 0
        %500 = vmatpush2.bf16.msra.mxu0 0
        %501 = vmatprep.subr.bf16.mxu0 0
        %502 = vmatpush2.bf16.msra.mxu0 0
        %503 = vmatprep.subr.bf16.mxu0 0
        %504 = vmatpush2.bf16.msra.mxu0 0
        %505 = vmatprep.subr.bf16.mxu0 0
        %506 = vmatpush2.bf16.msra.mxu0 0
        %507 = vmatprep.subr.bf16.mxu0 0
        %508 = vmatpush2.bf16.msra.mxu0 0
        %509 = vmatprep.subr.bf16.mxu0 0
        %510 = vmatpush2.bf16.msra.mxu0 0
        %511 = vmatprep.subr.bf16.mxu0 0
        %512 = vmatpush2.bf16.msra.mxu0 0
        %513 = vmatprep.mubr.bf16.mxu0 0
        %514 = vmatmul.mubr.bf16.gmra.mxu0 %v417
        %v515 = vpop.f32.mrf.mxu0
        %v516 = vadd.f32 0.0, %v515
        %v517 = vpop.f32.mrf.mxu0
        %v518 = vpop.f32.mrf.mxu0
        %v519 = vadd.f32 0.0, %v518
        %v520 = vpop.f32.mrf.mxu0
        %521 = vmatprep.mubr.bf16.mxu0 0
        %522 = vmatmul.mubr.bf16.gmra.mxu0 %v418
        %v523 = vpop.f32.mrf.mxu0
        %v524 = vadd.f32 0.0, %v523
        %v525 = vpop.f32.mrf.mxu0
        %v526 = vpop.f32.mrf.mxu0
        %v527 = vadd.f32 0.0, %v526
        %v528 = vpop.f32.mrf.mxu0
        %529 = vmatprep.mubr.bf16.mxu0 0
        %530 = vmatmul.mubr.bf16.gmra.mxu0 %v419
        %v531 = vpop.f32.mrf.mxu0
        %v532 = vadd.f32 0.0, %v531
        %v533 = vpop.f32.mrf.mxu0
        %v534 = vpop.f32.mrf.mxu0
        %v535 = vadd.f32 0.0, %v534
        %v536 = vpop.f32.mrf.mxu0
        %537 = vmatprep.mubr.bf16.mxu0 0
        %538 = vmatmul.mubr.bf16.gmra.mxu0 %v420
        %v539 = vpop.f32.mrf.mxu0
        %v540 = vadd.f32 0.0, %v539
        %v541 = vpop.f32.mrf.mxu0
        %v542 = vpop.f32.mrf.mxu0
        %v543 = vadd.f32 0.0, %v542
        %v544 = vpop.f32.mrf.mxu0
        %545 = vmatprep.mubr.bf16.mxu0 0
        %546 = vmatmul.mubr.bf16.gmra.mxu0 %v421
        %v547 = vpop.f32.mrf.mxu0
        %v548 = vadd.f32 0.0, %v547
        %v549 = vpop.f32.mrf.mxu0
        %v550 = vpop.f32.mrf.mxu0
        %v551 = vadd.f32 0.0, %v550
        %v552 = vpop.f32.mrf.mxu0
        %553 = vmatprep.mubr.bf16.mxu0 0
        %554 = vmatmul.mubr.bf16.gmra.mxu0 %v422
        %v555 = vpop.f32.mrf.mxu0
        %v556 = vadd.f32 0.0, %v555
        %v557 = vpop.f32.mrf.mxu0
        %v558 = vpop.f32.mrf.mxu0
        %v559 = vadd.f32 0.0, %v558
        %v560 = vpop.f32.mrf.mxu0
        %561 = vmatprep.mubr.bf16.mxu0 0
        %562 = vmatmul.mubr.bf16.gmra.mxu0 %v423
        %v563 = vpop.f32.mrf.mxu0
        %v564 = vadd.f32 0.0, %v563
        %v565 = vpop.f32.mrf.mxu0
        %v566 = vpop.f32.mrf.mxu0
        %v567 = vadd.f32 0.0, %v566
        %v568 = vpop.f32.mrf.mxu0
        %569 = vmatprep.mubr.bf16.mxu0 0
        %570 = vmatmul.mubr.bf16.gmra.mxu0 %v424
        %v571 = vpop.f32.mrf.mxu0
        %v572 = vadd.f32 0.0, %v571
        %v573 = vpop.f32.mrf.mxu0
        %v574 = vpop.f32.mrf.mxu0
        %v575 = vadd.f32 0.0, %v574
        %v576 = vpop.f32.mrf.mxu0
        %577 = vdwg.mxu0
        %v578 = vadd.f32 %v337, %v516
        %v579 = vadd.f32 %v338, %v519
        %v580 = vadd.f32 %v339, %v524
        %v581 = vadd.f32 %v340, %v527
        %v582 = vadd.f32 %v341, %v532
        %v583 = vadd.f32 %v342, %v535
        %v584 = vadd.f32 %v343, %v540
        %v585 = vadd.f32 %v344, %v543
        %v586 = vadd.f32 %v345, %v548
        %v587 = vadd.f32 %v346, %v551
        %v588 = vadd.f32 %v347, %v556
        %v589 = vadd.f32 %v348, %v559
        %v590 = vadd.f32 %v349, %v564
        %v591 = vadd.f32 %v350, %v567
        %v592 = vadd.f32 %v351, %v572
        %v593 = vadd.f32 %v352, %v575
        %vm594 = vcmask 261120
        %595 = vst.msk [vmem:[#allocation2] sm:$0xff] %vm594, %v578
        %596 = vst.msk [vmem:[#allocation2 + $0x8] sm:$0xff] %vm594, %v579
        %597 = vst.msk [vmem:[#allocation2 + $0x10] sm:$0xff] %vm594, %v580
        %598 = vst.msk [vmem:[#allocation2 + $0x18] sm:$0xff] %vm594, %v581
        %599 = vst.msk [vmem:[#allocation2 + $0x20] sm:$0xff] %vm594, %v582
        %600 = vst.msk [vmem:[#allocation2 + $0x28] sm:$0xff] %vm594, %v583
        %601 = vst.msk [vmem:[#allocation2 + $0x30] sm:$0xff] %vm594, %v584
        %602 = vst.msk [vmem:[#allocation2 + $0x38] sm:$0xff] %vm594, %v585
        %603 = vst.msk [vmem:[#allocation2 + $0x40] sm:$0xff] %vm594, %v586
        %604 = vst.msk [vmem:[#allocation2 + $0x48] sm:$0xff] %vm594, %v587
        %605 = vst.msk [vmem:[#allocation2 + $0x50] sm:$0xff] %vm594, %v588
        %606 = vst.msk [vmem:[#allocation2 + $0x58] sm:$0xff] %vm594, %v589
        %607 = vst.msk [vmem:[#allocation2 + $0x60] sm:$0xff] %vm594, %v590
        %608 = vst.msk [vmem:[#allocation2 + $0x68] sm:$0xff] %vm594, %v591
        %609 = vst.msk [vmem:[#allocation2 + $0x70] sm:$0xff] %vm594, %v592
        %610 = vst.msk [vmem:[#allocation2 + $0x78] sm:$0xff] %vm594, %v593
        %p611 = scmp.eq.s32.totalorder %s19, 1
        // Predicated region
        $region78: #{gnn_forward.3} parent=68 // pred_check
          %p612 = pneg %p611
        $region79: #{gnn_forward.3} parent=68 // pred_check_branch
          %614 = sbr.rel (%p612) target = $region81
        $region80: #{gnn_forward.3} parent=68 // pred_region
          %v615 = vld [vmem:[#allocation2] sm:$0xff]
          %v616 = vld [vmem:[#allocation2 + $0x8] sm:$0xff]
          %v617 = vld [vmem:[#allocation2 + $0x10] sm:$0xff]
          %v618 = vld [vmem:[#allocation2 + $0x18] sm:$0xff]
          %v619 = vld [vmem:[#allocation2 + $0x20] sm:$0xff]
          %v620 = vld [vmem:[#allocation2 + $0x28] sm:$0xff]
          %v621 = vld [vmem:[#allocation2 + $0x30] sm:$0xff]
          %v622 = vld [vmem:[#allocation2 + $0x38] sm:$0xff]
          %v623 = vld [vmem:[#allocation2 + $0x40] sm:$0xff]
          %v624 = vld [vmem:[#allocation2 + $0x48] sm:$0xff]
          %v625 = vld [vmem:[#allocation2 + $0x50] sm:$0xff]
          %v626 = vld [vmem:[#allocation2 + $0x58] sm:$0xff]
          %v627 = vld [vmem:[#allocation2 + $0x60] sm:$0xff]
          %v628 = vld [vmem:[#allocation2 + $0x68] sm:$0xff]
          %v629 = vld [vmem:[#allocation2 + $0x70] sm:$0xff]
          %v630 = vld [vmem:[#allocation2 + $0x78] sm:$0xff]
          %v631 = vld [vmem:[%s2] sm:$0x1]
          %v633 = vlaneseq
          %v634 = vshrl.u32 %v633, 7
          %v635 = vsub.s32 0, %v634
          %v636 = vrot.slane %v631, %v635
          %v638 = vadd.f32 %v615, %v636
          %v639 = vadd.f32 %v616, %v636
          %v640 = vadd.f32 %v617, %v636
          %v641 = vadd.f32 %v618, %v636
          %v642 = vadd.f32 %v619, %v636
          %v643 = vadd.f32 %v620, %v636
          %v644 = vadd.f32 %v621, %v636
          %v645 = vadd.f32 %v622, %v636
          %v646 = vadd.f32 %v623, %v636
          %v647 = vadd.f32 %v624, %v636
          %v648 = vadd.f32 %v625, %v636
          %v649 = vadd.f32 %v626, %v636
          %v650 = vadd.f32 %v627, %v636
          %v651 = vadd.f32 %v628, %v636
          %v652 = vadd.f32 %v629, %v636
          %v653 = vadd.f32 %v630, %v636
          %v654 = vmax.f32 %v638, 0.0
          %v655 = vmax.f32 %v639, 0.0
          %v656 = vmax.f32 %v640, 0.0
          %v657 = vmax.f32 %v641, 0.0
          %v658 = vmax.f32 %v642, 0.0
          %v659 = vmax.f32 %v643, 0.0
          %v660 = vmax.f32 %v644, 0.0
          %v661 = vmax.f32 %v645, 0.0
          %v662 = vmax.f32 %v646, 0.0
          %v663 = vmax.f32 %v647, 0.0
          %v664 = vmax.f32 %v648, 0.0
          %v665 = vmax.f32 %v649, 0.0
          %v666 = vmax.f32 %v650, 0.0
          %v667 = vmax.f32 %v651, 0.0
          %v668 = vmax.f32 %v652, 0.0
          %v669 = vmax.f32 %v653, 0.0
          %670 = vst.msk [vmem:[%s313] sm:$0xff] %vm594, %v654
          %671 = vst.msk [vmem:[%s313 + $0x8] sm:$0xff] %vm594, %v655
          %672 = vst.msk [vmem:[%s313 + $0x10] sm:$0xff] %vm594, %v656
          %673 = vst.msk [vmem:[%s313 + $0x18] sm:$0xff] %vm594, %v657
          %674 = vst.msk [vmem:[%s313 + $0x20] sm:$0xff] %vm594, %v658
          %675 = vst.msk [vmem:[%s313 + $0x28] sm:$0xff] %vm594, %v659
          %676 = vst.msk [vmem:[%s313 + $0x30] sm:$0xff] %vm594, %v660
          %677 = vst.msk [vmem:[%s313 + $0x38] sm:$0xff] %vm594, %v661
          %678 = vst.msk [vmem:[%s313 + $0x40] sm:$0xff] %vm594, %v662
          %679 = vst.msk [vmem:[%s313 + $0x48] sm:$0xff] %vm594, %v663
          %680 = vst.msk [vmem:[%s313 + $0x50] sm:$0xff] %vm594, %v664
          %681 = vst.msk [vmem:[%s313 + $0x58] sm:$0xff] %vm594, %v665
          %682 = vst.msk [vmem:[%s313 + $0x60] sm:$0xff] %vm594, %v666
          %683 = vst.msk [vmem:[%s313 + $0x68] sm:$0xff] %vm594, %v667
          %684 = vst.msk [vmem:[%s313 + $0x70] sm:$0xff] %vm594, %v668
          %685 = vst.msk [vmem:[%s313 + $0x78] sm:$0xff] %vm594, %v669
        $region81: #{gnn_forward.3} parent=68 // pred_fallthru
          _
        %s686 = smul.u32 16, %s18
        %p687 = scmp.lt.s32.totalorder %s686, 31
        %s688 = scalar_select %p687, %s686, 31
        %s689 = smul.addr %s688, 8
        %s690 = scalar_lea.vmem %s3, %s689
        // Predicated region
        $region82: #{gnn_forward.3} parent=68 // pred_check
          %p691 = pneg %p119
        $region83: #{gnn_forward.3} parent=68 // pred_check_branch
          %693 = sbr.rel (%p691) target = $region85
        $region84: #{gnn_forward.3} parent=68 // pred_region
          %s694 = smul.u32 16, %s18
        $region85: #{gnn_forward.3} parent=68 // pred_fallthru
          _
      $region69: #{gnn_forward.3} parent=5 // pred_fallthru
        _
      %p695 = scmp.le.s32.totalorder 2, %s9
      // Predicated region
      $region86: #{gnn_forward.3} parent=5 // pred_check
        %p696 = pneg %p695
      $region87: #{gnn_forward.3} parent=5 // pred_check_branch
        %698 = sbr.rel (%p696) target = $region89
      $region88: #{gnn_forward.3} parent=5 // pred_region
        %s699 = ssub.s32 %s9, 2
        // Predicated region
        $region90: #{gnn_forward.3} parent=88 // pred_check
          %p700 = pneg %p125
        $region91: #{gnn_forward.3} parent=88 // pred_check_branch
          %702 = sbr.rel (%p700) target = $region93
        $region92: #{gnn_forward.3} parent=88 // pred_region
          %s703 = smul.u32 16, %s20
          %p704 = scmp.lt.s32.totalorder %s703, 31
          %s705 = scalar_select %p704, %s703, 31
          %s706 = smul.addr %s705, 8
          %s707 = scalar_lea.vmem %s3, %s706
        $region93: #{gnn_forward.3} parent=88 // pred_fallthru
          _
      $region89: #{gnn_forward.3} parent=5 // pred_fallthru
        _
    $region6: #{gnn_forward.3} parent=1 // loop_footer
      %s13 = sadd.s32 1, %s9
    $region7: #{gnn_forward.3} parent=1 // loop_footer_branch
      %8 = sbr.rel target = $region3
    $region8: #{gnn_forward.3} parent=1 // loop_exit
      _

</llo_original>
